<compile_context>
chip_gen: v7x
topology: tpu7x:2x2x1
jax: 0.10.0
libtpu: 0.0.40
codegen_flags: <defaults>
</compile_context>

<pallas_src>
import functools

import numpy as np
import jax
import jax.numpy as jnp
from jax.experimental import pallas as pl
from jax.experimental.pallas import tpu as pltpu

POOL_SIZES = (1, 2, 3, 6)
EPS = 1e-5          # nn.InstanceNorm2d default eps
NEG_SLOPE = 0.01    # nn.LeakyReLU default negative_slope
K_UP = 64           # padded K for the fused upsample matmul (50 pooled + 1 bias col)
SUBLANE = 8
LANE = 128


# ----------------------------- Pallas kernels ------------------------------ #
def ppm_fused_norm_kernel(x_ref, mt_ref, st_ref, wfxt_ref, o_ref, *, precision):
    """Single-pass path.  One (batch, channel-tile) grid point.

    The block holds its channel slab over the FULL spatial extent, so the
    InstanceNorm statistics are exact and local:
        y   = Wfx^T_tile @ x + S^T_tile @ M^T        (tile_c, HW)
        out = LeakyReLU((y - mean) * rsqrt(var + eps))
    The pre-norm y never leaves VMEM.
    """
    acc = jnp.dot(wfxt_ref[...], x_ref[0],
                  preferred_element_type=jnp.float32, precision=precision)
    acc = acc + jnp.dot(st_ref[0], mt_ref[...],
                        preferred_element_type=jnp.float32, precision=precision)
    inv_hw = 1.0 / acc.shape[1]
    mean = jnp.sum(acc, axis=1, keepdims=True) * inv_hw
    cen = acc - mean
    var = jnp.sum(cen * cen, axis=1, keepdims=True) * inv_hw
    yn = cen * jax.lax.rsqrt(var + EPS)
    # LeakyReLU via a single VPU max (slope < 1).
    o_ref[0] = jnp.maximum(yn, NEG_SLOPE * yn).astype(o_ref.dtype)


def ppm_fused_kernel(x_ref, mt_ref, st_ref, wfxt_ref, y_ref, mean_ref, m2_ref,
                     *, precision):
    """Two-pass path, pass 1.  One (batch, HW-tile) grid point.

    Emits the pre-norm y tile plus per-tile per-channel (mean, centered M2)
    so the host can do a numerically safe Chan combine.
    """
    acc = jnp.dot(wfxt_ref[...], x_ref[0],
                  preferred_element_type=jnp.float32, precision=precision)
    acc = acc + jnp.dot(st_ref[0], mt_ref[...],
                        preferred_element_type=jnp.float32, precision=precision)
    y_ref[0] = acc.astype(y_ref.dtype)
    inv_t = 1.0 / acc.shape[1]
    tmean = jnp.sum(acc, axis=1, keepdims=True) * inv_t
    cen = acc - tmean
    mean_ref[0, 0] = tmean
    m2_ref[0, 0] = jnp.sum(cen * cen, axis=1, keepdims=True)


def instnorm_lrelu_kernel(y_ref, mean_ref, rstd_ref, o_ref):
    """Two-pass path, pass 2: elementwise InstanceNorm + LeakyReLU(0.01)."""
    y = y_ref[0].astype(jnp.float32)
    yn = (y - mean_ref[0]) * rstd_ref[0]
    o_ref[0] = jnp.maximum(yn, NEG_SLOPE * yn).astype(o_ref.dtype)


# ------------------------------ host helpers -------------------------------- #
def interp_matrix(out_size, in_size):
    """Bilinear interpolation matrix, align_corners=True (rows sum to 1)."""
    if in_size == 1:
        return np.ones((out_size, 1), np.float32)
    src = np.arange(out_size, dtype=np.float64) * (in_size - 1) / (out_size - 1)
    lo = np.clip(np.floor(src).astype(np.int64), 0, in_size - 2)
    frac = src - lo
    U = np.zeros((out_size, in_size), np.float64)
    U[np.arange(out_size), lo] += 1.0 - frac
    U[np.arange(out_size), lo + 1] += frac
    return U.astype(np.float32)


def adaptive_max_pool_nchw(x, ps):
    """nn.AdaptiveMaxPool2d(ps) semantics on an NCHW tensor (small ps)."""
    N, C, H, W = x.shape
    rows = []
    for i in range(ps):
        hs, he = (i * H) // ps, -((-(i + 1) * H) // ps)
        cols = []
        for j in range(ps):
            ws, we = (j * W) // ps, -((-(j + 1) * W) // ps)
            cols.append(jnp.max(x[:, :, hs:he, ws:we], axis=(2, 3)))   # (N, C)
        rows.append(jnp.stack(cols, axis=-1))                          # (N, C, ps)
    return jnp.stack(rows, axis=-2)                                    # (N, C, ps, ps)


def init_params(key, c_in, c_out):
    ks = jax.random.split(key, 10)
    params = {"w": [], "b": []}
    for i in range(4):
        params["w"].append(0.1 * jax.random.normal(ks[2 * i], (c_in, c_out), jnp.float32))
        params["b"].append(0.1 * jax.random.normal(ks[2 * i + 1], (c_out,), jnp.float32))
    c_cat = c_in + 4 * c_out
    params["wf"] = 0.1 * jax.random.normal(ks[8], (c_cat, 4 * c_out), jnp.float32)
    params["bf"] = 0.1 * jax.random.normal(ks[9], (4 * c_out,), jnp.float32)
    return params


def _round_up(v, m):
    return ((v + m - 1) // m) * m


def _vmem_limit_bytes():
    """Derive the Mosaic VMEM limit from the actual part (64 MiB v7x, 128 v5e/v6e)."""
    cap = 64 * 1024 * 1024
    try:
        info = pltpu.get_tpu_info()
        cap = int(getattr(info, "vmem_capacity_bytes", cap) or cap)
    except Exception:
        pass
    return int(min(0.75 * cap, 100 * 1024 * 1024))


# ------------------------------ main wrapper -------------------------------- #
def ppmhead_pallas(x_nchw, params, *, compute_dtype=jnp.float32,
                   force_two_pass=False, tile_hw=None):
    N, C_in, H, W = x_nchw.shape
    C_out = params["w"][0].shape[1]
    C4 = 4 * C_out
    C4p = _round_up(C4, SUBLANE)          # sublane padding only; lanes come from HW
    HW = H * W
    cds = jnp.dtype(compute_dtype).itemsize
    is_f32 = jnp.dtype(compute_dtype) == jnp.dtype(jnp.float32)
    prec = jax.lax.Precision.HIGHEST if is_f32 else None

    # ------------------------ host-side folding (tiny) ---------------------- #
    # x stays NCHW: flattening the spatial dims is a free reshape (no copy).
    x_flat = x_nchw.reshape(N, C_in, HW)

    wf, bf = params["wf"], params["bf"]
    # Final-conv weight rows are ordered [branch0..branch3, x].
    wfxt = jnp.pad(wf[4 * C_out:].T, ((0, C4p - C4), (0, 0)))          # (C4p, C_in)

    st_cols, mt_rows = [], []
    for i, ps in enumerate(POOL_SIZES):
        wf_i = wf[i * C_out:(i + 1) * C_out]                           # (C_out, C4)
        w_fused = jnp.einsum("xo,oc->xc", params["w"][i], wf_i, precision=prec)
        b_fused = jnp.einsum("o,oc->c", params["b"][i], wf_i, precision=prec)
        pooled = adaptive_max_pool_nchw(x_nchw, ps).reshape(N, C_in, ps * ps)
        st_i = jnp.einsum("xc,nxp->ncp", w_fused, pooled, precision=prec) \
            + b_fused[None, :, None]                                   # (N, C4, ps*ps)
        st_cols.append(st_i)
        Uh, Uw = interp_matrix(H, ps), interp_matrix(W, ps)
        mt_rows.append(np.kron(Uh, Uw).T)                              # (ps*ps, HW)
    # Bias trick: an all-ones M^T row times a bf S^T column adds bf exactly once
    # per pixel (bilinear rows sum to 1, so the branch biases pass through too).
    st_cols.append(jnp.broadcast_to(bf[None, :, None], (N, C4, 1)))
    mt_rows.append(np.ones((1, HW), np.float32))

    St = jnp.concatenate(st_cols, axis=2)                              # (N, C4, 51)
    k_real = St.shape[2]
    assert k_real <= K_UP
    St = jnp.pad(St, ((0, 0), (0, C4p - C4), (0, K_UP - k_real)))      # (N, C4p, 64)
    Mt = np.concatenate(mt_rows, axis=0)
    Mt = np.pad(Mt, ((0, K_UP - Mt.shape[0]), (0, 0)))                 # (64, HW)

    x_c = x_flat.astype(compute_dtype)
    mt_c = jnp.asarray(Mt, compute_dtype)
    st_c = St.astype(compute_dtype)
    wfxt_c = wfxt.astype(compute_dtype)

    vmem_limit = _vmem_limit_bytes()
    budget = int(0.7 * vmem_limit)
    flops = 2 * N * C4p * HW * (C_in + K_UP)
    in_bytes = sum(int(a.size) * a.dtype.itemsize for a in (x_c, mt_c, st_c, wfxt_c))
    out_bytes = N * C4p * HW * cds

    compiler_params = pltpu.CompilerParams(
        dimension_semantics=("parallel", "parallel"),
        vmem_limit_bytes=vmem_limit)

    # ------------- fused single-pass path (y never touches HBM) ------------- #
    def _path_a_bytes(tc):
        # double-buffered operands + f32 accumulator / temporaries
        return (2 * C_in * HW * cds + 2 * K_UP * HW * cds
                + 2 * tc * (C_in + K_UP) * cds
                + 2 * tc * HW * cds + 2 * tc * HW * 4)

    tile_c = None
    if not force_two_pass and tile_hw is None:
        cands = [d for d in range(SUBLANE, min(C4p, 512) + 1, SUBLANE)
                 if C4p % d == 0]
        for tc in sorted(cands, reverse=True):
            if _path_a_bytes(tc) <= budget:
                tile_c = tc
                break

    if tile_c is not None:
        out = pl.pallas_call(
            functools.partial(ppm_fused_norm_kernel, precision=prec),
            out_shape=jax.ShapeDtypeStruct((N, C4p, HW), compute_dtype),
            grid=(N, C4p // tile_c),
            in_specs=[
                pl.BlockSpec((1, C_in, HW), lambda n, c: (n, 0, 0)),
                pl.BlockSpec((K_UP, HW), lambda n, c: (0, 0)),
                pl.BlockSpec((1, tile_c, K_UP), lambda n, c: (n, c, 0)),
                pl.BlockSpec((tile_c, C_in), lambda n, c: (c, 0)),
            ],
            out_specs=pl.BlockSpec((1, tile_c, HW), lambda n, c: (n, c, 0)),
            compiler_params=compiler_params,
            cost_estimate=pl.CostEstimate(
                flops=flops, transcendentals=0,
                bytes_accessed=int(in_bytes + out_bytes)),
        )(x_c, mt_c, st_c, wfxt_c)
    else:
        # ---------------- two-pass HW-tiled path (large HW) ----------------- #
        if tile_hw is None:
            per_hw = 2 * (C_in + K_UP + C4p) * cds + C4p * 4
            fixed = 2 * C4p * (K_UP + C_in) * cds
            cands = sorted([d for d in range(LANE, HW + 1, LANE) if HW % d == 0],
                           reverse=True)
            if not cands:
                # TODO(synk): pad/mask the HW axis when HW is not a multiple of 128.
                raise NotImplementedError("two-pass path requires HW % 128 == 0")
            tile_hw = next((d for d in cands if fixed + per_hw * d <= budget),
                           cands[-1])
        assert HW % tile_hw == 0 and (tile_hw % LANE == 0 or tile_hw == HW)
        T = HW // tile_hw

        y, tmean, tm2 = pl.pallas_call(
            functools.partial(ppm_fused_kernel, precision=prec),
            out_shape=(
                jax.ShapeDtypeStruct((N, C4p, HW), compute_dtype),
                jax.ShapeDtypeStruct((N, T, C4p, 1), jnp.float32),
                jax.ShapeDtypeStruct((N, T, C4p, 1), jnp.float32),
            ),
            grid=(N, T),
            in_specs=[
                pl.BlockSpec((1, C_in, tile_hw), lambda n, t: (n, 0, t)),
                pl.BlockSpec((K_UP, tile_hw), lambda n, t: (0, t)),
                pl.BlockSpec((1, C4p, K_UP), lambda n, t: (n, 0, 0)),
                pl.BlockSpec((C4p, C_in), lambda n, t: (0, 0)),
            ],
            out_specs=(
                pl.BlockSpec((1, C4p, tile_hw), lambda n, t: (n, 0, t)),
                pl.BlockSpec((1, 1, C4p, 1), lambda n, t: (n, t, 0, 0)),
                pl.BlockSpec((1, 1, C4p, 1), lambda n, t: (n, t, 0, 0)),
            ),
            compiler_params=compiler_params,
            cost_estimate=pl.CostEstimate(
                flops=flops, transcendentals=0,
                bytes_accessed=int(in_bytes + out_bytes + 2 * N * T * C4p * 4)),
        )(x_c, mt_c, st_c, wfxt_c)

        # InstanceNorm stats: Chan combine of per-tile (mean, centered M2) in f32
        # (avoids the E[x^2]-E[x]^2 cancellation flagged in the review).
        tmean = tmean[..., 0]                                          # (N, T, C4p)
        mean = jnp.mean(tmean, axis=1)                                 # (N, C4p)
        m2 = jnp.sum(tm2[..., 0], axis=1) \
            + tile_hw * jnp.sum((tmean - mean[:, None, :]) ** 2, axis=1)
        rstd = jax.lax.rsqrt(jnp.maximum(m2 / HW, 0.0) + EPS)

        out = pl.pallas_call(
            instnorm_lrelu_kernel,
            out_shape=jax.ShapeDtypeStruct((N, C4p, HW), compute_dtype),
            grid=(N, T),
            in_specs=[
                pl.BlockSpec((1, C4p, tile_hw), lambda n, t: (n, 0, t)),
                pl.BlockSpec((1, C4p, 1), lambda n, t: (n, 0, 0)),
                pl.BlockSpec((1, C4p, 1), lambda n, t: (n, 0, 0)),
            ],
            out_specs=pl.BlockSpec((1, C4p, tile_hw), lambda n, t: (n, 0, t)),
            compiler_params=compiler_params,
        )(y, mean[:, :, None], rstd[:, :, None])

    if C4p != C4:                       # rare (C4 not a multiple of 8)
        out = out[:, :C4]
    return out.reshape(N, C4, H, W)     # already channels-first: free reshape


# ------------------------------ reference ----------------------------------- #
def ppmhead_reference(x_nchw, params, precision=jax.lax.Precision.HIGHEST):
    """Pure-JAX reference mirroring the PyTorch forward."""
    N, C_in, H, W = x_nchw.shape
    outs = []
    for idx, ps in enumerate(POOL_SIZES):
        p = adaptive_max_pool_nchw(x_nchw, ps)
        conv = jnp.einsum("ncij,co->noij", p, params["w"][idx], precision=precision) \
            + params["b"][idx][None, :, None, None]
        Uh = jnp.asarray(interp_matrix(H, ps))
        Uw = jnp.asarray(interp_matrix(W, ps))
        up = jnp.einsum("hp,ncpq,wq->nchw", Uh, conv, Uw, precision=precision)
        outs.append(up)
    outs.append(x_nchw)
    cat = jnp.concatenate(outs, axis=1)
    y = jnp.einsum("nchw,co->nohw", cat, params["wf"], precision=precision) \
        + params["bf"][None, :, None, None]
    mean = jnp.mean(y, axis=(2, 3), keepdims=True)
    var = jnp.mean((y - mean) ** 2, axis=(2, 3), keepdims=True)
    yn = (y - mean) / jnp.sqrt(var + EPS)
    return jnp.where(yn >= 0, yn, NEG_SLOPE * yn)


if __name__ == "__main__":
    key = jax.random.PRNGKey(0)
    k_x, k_p = jax.random.split(key)

    N, C_in, C_out, H, W = 2, 8, 8, 16, 16
    x = jax.random.normal(k_x, (N, C_in, H, W), jnp.float32)
    params = init_params(k_p, C_in, C_out)

    ref = jax.block_until_ready(ppmhead_reference(x, params))

    # Fused single-pass path (used for decoder-head-sized maps); f32 strict check.
    out_a = jax.block_until_ready(ppmhead_pallas(x, params, compute_dtype=jnp.float32))
    assert out_a.shape == (N, 4 * C_out, H, W), out_a.shape
    np.testing.assert_allclose(np.asarray(out_a), np.asarray(ref), rtol=1e-4, atol=1e-4)

    # Two-pass HW-tiled fallback (large-HW path), forced with tile_hw=128 so the
    # multi-tile Chan-combined InstanceNorm stats path is exercised; f32 strict.
    out_b = jax.block_until_ready(
        ppmhead_pallas(x, params, compute_dtype=jnp.float32,
                       force_two_pass=True, tile_hw=128))
    np.testing.assert_allclose(np.asarray(out_b), np.asarray(ref), rtol=1e-4, atol=1e-4)

    # bf16 production path: half the HBM traffic, native MXU rate; loose check
    # (bf16 quantization of inputs/weights/output, f32 accumulation and stats).
    out_bf = jax.block_until_ready(ppmhead_pallas(x, params, compute_dtype=jnp.bfloat16))
    np.testing.assert_allclose(np.asarray(out_bf.astype(jnp.float32)),
                               np.asarray(ref), rtol=0.1, atol=0.1)

    print("KERNEL_OK")
</pallas_src>

<mosaic_0001>
module attributes {stable_mosaic.version = 11 : i64} {
  func.func @ppm_fused_norm_kernel(%arg0: i32, %arg1: i32, %arg2: memref<1x8x256xf32, #tpu.memory_space<vmem>>, %arg3: memref<64x256xf32, #tpu.memory_space<vmem>>, %arg4: memref<1x32x64xf32, #tpu.memory_space<vmem>>, %arg5: memref<32x8xf32, #tpu.memory_space<vmem>>, %arg6: memref<1x32x256xf32, #tpu.memory_space<vmem>>) attributes {dimension_semantics = [#tpu.dimension_semantics<parallel>, #tpu.dimension_semantics<parallel>], iteration_bounds = array<i64: 2, 1>, scalar_prefetch = 0 : i64, scratch_operands = 0 : i64, tpu.core_type = #tpu.core_type<tc>, window_params = [{transform_indices = @transform_0, window_bounds = array<i64: 1, 8, 256>}, {pipeline_mode = #tpu.pipeline_mode<synchronous>, transform_indices = @transform_1, window_bounds = array<i64: 64, 256>}, {transform_indices = @transform_2, window_bounds = array<i64: 1, 32, 64>}, {transform_indices = @transform_3, window_bounds = array<i64: 32, 8>}, {transform_indices = @transform_4, window_bounds = array<i64: 1, 32, 256>}]} {
    %c0 = arith.constant 0 : index
    %c0_0 = arith.constant 0 : index
    %0 = vector.load %arg5[%c0, %c0_0] : memref<32x8xf32, #tpu.memory_space<vmem>>, vector<32x8xf32>
    %c0_1 = arith.constant 0 : index
    %c0_2 = arith.constant 0 : index
    %c0_3 = arith.constant 0 : index
    %1 = vector.load %arg2[%c0_1, %c0_2, %c0_3] : memref<1x8x256xf32, #tpu.memory_space<vmem>>, vector<1x8x256xf32>
    %2 = vector.shape_cast %1 : vector<1x8x256xf32> to vector<8x256xf32>
    %cst = arith.constant dense<0.000000e+00> : vector<32x256xf32>
    %3 = tpu.matmul %0, %2, %cst {dimension_numbers = #tpu.dot_dimension_numbers<[1], [0], [0], [1], [0, 0, 1, 1], [], []>, precision = #tpu.contract_precision<fp32>} : vector<32x8xf32>, vector<8x256xf32>, vector<32x256xf32> -> vector<32x256xf32>
    %c0_4 = arith.constant 0 : index
    %c0_5 = arith.constant 0 : index
    %c0_6 = arith.constant 0 : index
    %4 = vector.load %arg4[%c0_4, %c0_5, %c0_6] : memref<1x32x64xf32, #tpu.memory_space<vmem>>, vector<1x32x64xf32>
    %5 = vector.shape_cast %4 : vector<1x32x64xf32> to vector<32x64xf32>
    %c0_7 = arith.constant 0 : index
    %c0_8 = arith.constant 0 : index
    %6 = vector.load %arg3[%c0_7, %c0_8] : memref<64x256xf32, #tpu.memory_space<vmem>>, vector<64x256xf32>
    %cst_9 = arith.constant dense<0.000000e+00> : vector<32x256xf32>
    %7 = tpu.matmul %5, %6, %cst_9 {dimension_numbers = #tpu.dot_dimension_numbers<[1], [0], [0], [1], [0, 0, 1, 1], [], []>, precision = #tpu.contract_precision<fp32>} : vector<32x64xf32>, vector<64x256xf32>, vector<32x256xf32> -> vector<32x256xf32>
    %8 = arith.addf %3, %7 : vector<32x256xf32>
    %cst_10 = arith.constant dense<0.000000e+00> : vector<32xf32>
    %9 = vector.multi_reduction <add>, %8, %cst_10 [1] : vector<32x256xf32> to vector<32xf32>
    %10 = vector.shape_cast %9 : vector<32xf32> to vector<32x1xf32>
    %cst_11 = arith.constant 3.906250e-03 : f32
    %11 = vector.broadcast %cst_11 : f32 to vector<32x1xf32>
    %12 = arith.mulf %10, %11 : vector<32x1xf32>
    %13 = vector.broadcast %12 : vector<32x1xf32> to vector<32x256xf32>
    %14 = arith.subf %8, %13 : vector<32x256xf32>
    %15 = arith.mulf %14, %14 : vector<32x256xf32>
    %cst_12 = arith.constant dense<0.000000e+00> : vector<32xf32>
    %16 = vector.multi_reduction <add>, %15, %cst_12 [1] : vector<32x256xf32> to vector<32xf32>
    %17 = vector.shape_cast %16 : vector<32xf32> to vector<32x1xf32>
    %cst_13 = arith.constant 3.906250e-03 : f32
    %18 = vector.broadcast %cst_13 : f32 to vector<32x1xf32>
    %19 = arith.mulf %17, %18 : vector<32x1xf32>
    %cst_14 = arith.constant 9.99999974E-6 : f32
    %20 = vector.broadcast %cst_14 : f32 to vector<32x1xf32>
    %21 = arith.addf %19, %20 : vector<32x1xf32>
    %22 = math.rsqrt %21 : vector<32x1xf32>
    %23 = vector.broadcast %22 : vector<32x1xf32> to vector<32x256xf32>
    %24 = arith.mulf %14, %23 : vector<32x256xf32>
    %cst_15 = arith.constant 0.00999999977 : f32
    %25 = vector.broadcast %cst_15 : f32 to vector<32x256xf32>
    %26 = arith.mulf %25, %24 : vector<32x256xf32>
    %27 = arith.maximumf %24, %26 : vector<32x256xf32>
    %c0_16 = arith.constant 0 : index
    %c0_17 = arith.constant 0 : index
    %c0_18 = arith.constant 0 : index
    %28 = vector.load %arg6[%c0_16, %c0_17, %c0_18] : memref<1x32x256xf32, #tpu.memory_space<vmem>>, vector<1x32x256xf32>
    %29 = vector.shape_cast %28 : vector<1x32x256xf32> to vector<32x256xf32>
    %30 = vector.shape_cast %27 : vector<32x256xf32> to vector<1x32x256xf32>
    tpu.vector_store %arg6[%c0_16, %c0_17, %c0_18], %30 {strides = array<i32>} : memref<1x32x256xf32, #tpu.memory_space<vmem>>, vector<1x32x256xf32>,
    return
  }
  func.func @transform_0(%arg0: i32, %arg1: i32) -> (i32, i32, i32) {
    %c0_i32 = arith.constant 0 : i32
    %c0_i32_0 = arith.constant 0 : i32
    %c0_i32_1 = arith.constant 0 : i32
    return %arg0, %c0_i32, %c0_i32_0 : i32, i32, i32
  }
  func.func @transform_1(%arg0: i32, %arg1: i32) -> (i32, i32) {
    %c0_i32 = arith.constant 0 : i32
    %c0_i32_0 = arith.constant 0 : i32
    %c0_i32_1 = arith.constant 0 : i32
    return %c0_i32, %c0_i32_0 : i32, i32
  }
  func.func @transform_2(%arg0: i32, %arg1: i32) -> (i32, i32, i32) {
    %c0_i32 = arith.constant 0 : i32
    %c0_i32_0 = arith.constant 0 : i32
    return %arg0, %arg1, %c0_i32 : i32, i32, i32
  }
  func.func @transform_3(%arg0: i32, %arg1: i32) -> (i32, i32) {
    %c0_i32 = arith.constant 0 : i32
    %c0_i32_0 = arith.constant 0 : i32
    return %arg1, %c0_i32 : i32, i32
  }
  func.func @transform_4(%arg0: i32, %arg1: i32) -> (i32, i32, i32) {
    %c0_i32 = arith.constant 0 : i32
    %c0_i32_0 = arith.constant 0 : i32
    return %arg0, %arg1, %c0_i32 : i32, i32, i32
  }
}

</mosaic_0001>

<llo_original>
// kernel: tpu_custom_call.1
$region0: #{tpu_custom_call.1}
  #allocation0 [shape = 'u32[]', space=smem, size = 0x4, offset = 0x4, fixed_abs, tag = 'smem constant byte address 0x4 - core index']
  #allocation1 [shape = 'u32[144,128]{1,0:T(1,128)}', space=vmem, size = 0x12000, scoped, tag = 'internal scratch']
  %s0 = inlined_call_operand.vmem [shape: f32[2,8,256], index: 0, kind: input, shape index: {}]
  %s1 = inlined_call_operand.hbm [shape: f32[64,256], index: 1, kind: input, shape index: {}]
  %s2 = inlined_call_operand.hbm [shape: f32[2,32,64], index: 2, kind: input, shape index: {}]
  %s3 = inlined_call_operand.vmem [shape: f32[32,8], index: 3, kind: input, shape index: {}]
  %s4 = inlined_call_operand.hbm [shape: f32[2,32,256], index: 4, kind: output, shape index: {}]
  %s5 = sld [smem:[#allocation0]]
  $region57: #{tpu_custom_call.1} parent=0
    _
  %s7 = ssub.s32 1, %s5
  %s8 = scalar_select 0, %s7, %s5
  $region1: #{tpu_custom_call.1} parent=0
    #allocation2 [shape = 'u8[65536]{0}', space=vmem, size = 0x10000, scoped, tag = 'input window, operand 1, single buffered']
    #allocation3 [shape = 's32[2]{0}', space=sflag, size = 0x8, scoped, tag = 'scoped memory for tpu_custom_call.1']
    #allocation4 [shape = 's32[2]{0}', space=sflag, size = 0x8, scoped, tag = 'scoped memory for tpu_custom_call.1']
    #allocation5 [shape = 'u8[32768]{0}', space=vmem, size = 0x8000, scoped, tag = 'input window, operand 2']
    #allocation6 [shape = 's32[2]{0}', space=sflag, size = 0x8, scoped, tag = 'scoped memory for tpu_custom_call.1']
    #allocation7 [shape = 'u8[65536]{0}', space=vmem, size = 0x10000, scoped, tag = 'output window, operand 0']
    %9 = vsyncpa [#allocation3], 0
    %10 = vsyncpa [#allocation6], 0
    %s11 = scalar_lea.sflag [#allocation6], 1
    %12 = vsyncpa %s11, 0
    %13 = vsyncpa [#allocation4], 0
    %s14 = scalar_lea.sflag [#allocation4], 1
    %15 = vsyncpa %s14, 0
    loop: start=0, step=1, limit=4
    $region2: #{tpu_custom_call.1} parent=1 // loop_pre_header
      _
    $region3: #{tpu_custom_call.1} parent=1 // loop_header
      %s17 = sphi 0, %s21
      %p18 = scmp.ge.s32.totalorder %s17, 4
      %s24 = sphi 0, %s36
      %s25 = sphi 0, %s32
      %s26 = sphi 0, %s24
      %s27 = sphi 0, %s25
      %s28 = sphi 0, %s26
      %s29 = sphi 0, %s27
      %s39 = sphi 0, %s41
      %s42 = sphi 0, %s39
      %s43 = sphi 0, %s42
      %s59 = sphi 0, %s43
      %s63 = sphi 0, %s63
      %s65 = sphi 0, %s63
      %s66 = sphi 0, %s65
      %s80 = sphi 0, %s66
      %s88 = sphi 0, %s90
      %s91 = sphi 0, %s88
      %s92 = sphi 0, %s91
      %s108 = sphi 0, %s92
      %s114 = sphi 0, %s116
      %s117 = sphi 0, %s114
      %s118 = sphi 0, %s117
      %s134 = sphi 0, %s118
      %s142 = sphi 0, %s144
      %s145 = sphi 0, %s142
      %s146 = sphi 0, %s145
      %s162 = sphi 0, %s146
    $region4: #{tpu_custom_call.1} parent=1 // loop_header_branch
      %20 = sbr.rel (%p18) target = $region8
    $region5: #{tpu_custom_call.1} parent=1 // loop_body
      %s22 = ssub.s32 %s17, 1
      %s23 = ssub.s32 %s17, 2
      %s30 = sadd.s32 1, %s25
      %p31 = scmp.ge.s32.totalorder %s30, 1
      %s32 = scalar_select %p31, 0, %s30
      %s33 = sadd.s32 1, %s24
      %s34 = scalar_select %p31, %s33, %s24
      %p35 = scmp.ge.s32.totalorder %s34, 2
      %s36 = scalar_select %p35, 0, %s34
      %s37 = ssub.s32 %s24, %s36
      %p38 = scmp.eq.s32.totalorder %s37, 0
      %s40 = sadd.s32 %s39, 1
      %s41 = scalar_select %p38, %s39, %s40
      %p44 = pneg %p38
      %p45 = scmp.eq.s32.totalorder %s17, 1
      %p46 = por %p44, %p45
      %p47 = scmp.ne.s32.totalorder %s39, %s42
      %p48 = scmp.eq.s32.totalorder %s17, 0
      %p49 = por %p47, %p48
      %p50 = scmp.ne.s32.totalorder %s39, %s42
      %p51 = scmp.eq.s32.totalorder %s22, 1
      %p52 = por %p50, %p51
      %p53 = scmp.ne.s32.totalorder %s42, %s43
      %p54 = scmp.eq.s32.totalorder %s22, 0
      %p55 = por %p53, %p54
      %p56 = scmp.ne.s32.totalorder %s42, %s43
      %p57 = scmp.eq.s32.totalorder %s23, 1
      %p58 = por %p56, %p57
      %p60 = scmp.ne.s32.totalorder %s43, %s59
      %p61 = scmp.eq.s32.totalorder %s23, 0
      %p62 = por %p60, %p61
      %s64 = sadd.s32 %s63, 1
      %p67 = scmp.eq.s32.totalorder %s17, 1
      %p68 = scmp.ne.s32.totalorder %s63, %s65
      %p69 = scmp.eq.s32.totalorder %s17, 0
      %p70 = por %p68, %p69
      %p71 = scmp.ne.s32.totalorder %s63, %s65
      %p72 = scmp.eq.s32.totalorder %s22, 1
      %p73 = por %p71, %p72
      %p74 = scmp.ne.s32.totalorder %s65, %s66
      %p75 = scmp.eq.s32.totalorder %s22, 0
      %p76 = por %p74, %p75
      %p77 = scmp.ne.s32.totalorder %s65, %s66
      %p78 = scmp.eq.s32.totalorder %s23, 1
      %p79 = por %p77, %p78
      %p81 = scmp.ne.s32.totalorder %s66, %s80
      %p82 = scmp.eq.s32.totalorder %s23, 0
      %p83 = por %p81, %p82
      %s84 = ssub.s32 %s24, %s36
      %s85 = ssub.s32 %s25, %s32
      %s86 = sor.u32 %s84, %s85
      %p87 = scmp.eq.s32.totalorder %s86, 0
      %s89 = sadd.s32 %s88, 1
      %s90 = scalar_select %p87, %s88, %s89
      %p93 = pneg %p87
      %p94 = scmp.eq.s32.totalorder %s17, 1
      %p95 = por %p93, %p94
      %p96 = scmp.ne.s32.totalorder %s88, %s91
      %p97 = scmp.eq.s32.totalorder %s17, 0
      %p98 = por %p96, %p97
      %p99 = scmp.ne.s32.totalorder %s88, %s91
      %p100 = scmp.eq.s32.totalorder %s22, 1
      %p101 = por %p99, %p100
      %p102 = scmp.ne.s32.totalorder %s91, %s92
      %p103 = scmp.eq.s32.totalorder %s22, 0
      %p104 = por %p102, %p103
      %p105 = scmp.ne.s32.totalorder %s91, %s92
      %p106 = scmp.eq.s32.totalorder %s23, 1
      %p107 = por %p105, %p106
      %p109 = scmp.ne.s32.totalorder %s92, %s108
      %p110 = scmp.eq.s32.totalorder %s23, 0
      %p111 = por %p109, %p110
      %s112 = ssub.s32 %s25, %s32
      %p113 = scmp.eq.s32.totalorder %s112, 0
      %s115 = sadd.s32 %s114, 1
      %s116 = scalar_select %p113, %s114, %s115
      %p119 = pneg %p113
      %p120 = scmp.eq.s32.totalorder %s17, 1
      %p121 = por %p119, %p120
      %p122 = scmp.ne.s32.totalorder %s114, %s117
      %p123 = scmp.eq.s32.totalorder %s17, 0
      %p124 = por %p122, %p123
      %p125 = scmp.ne.s32.totalorder %s114, %s117
      %p126 = scmp.eq.s32.totalorder %s22, 1
      %p127 = por %p125, %p126
      %p128 = scmp.ne.s32.totalorder %s117, %s118
      %p129 = scmp.eq.s32.totalorder %s22, 0
      %p130 = por %p128, %p129
      %p131 = scmp.ne.s32.totalorder %s117, %s118
      %p132 = scmp.eq.s32.totalorder %s23, 1
      %p133 = por %p131, %p132
      %p135 = scmp.ne.s32.totalorder %s118, %s134
      %p136 = scmp.eq.s32.totalorder %s23, 0
      %p137 = por %p135, %p136
      %s138 = ssub.s32 %s24, %s36
      %s139 = ssub.s32 %s25, %s32
      %s140 = sor.u32 %s138, %s139
      %p141 = scmp.eq.s32.totalorder %s140, 0
      %s143 = sadd.s32 %s142, 1
      %s144 = scalar_select %p141, %s142, %s143
      %p147 = pneg %p141
      %p148 = scmp.eq.s32.totalorder %s17, 1
      %p149 = por %p147, %p148
      %p150 = scmp.ne.s32.totalorder %s142, %s145
      %p151 = scmp.eq.s32.totalorder %s17, 0
      %p152 = por %p150, %p151
      %p153 = scmp.ne.s32.totalorder %s142, %s145
      %p154 = scmp.eq.s32.totalorder %s22, 1
      %p155 = por %p153, %p154
      %p156 = scmp.ne.s32.totalorder %s145, %s146
      %p157 = scmp.eq.s32.totalorder %s22, 0
      %p158 = por %p156, %p157
      %p159 = scmp.ne.s32.totalorder %s145, %s146
      %p160 = scmp.eq.s32.totalorder %s23, 1
      %p161 = por %p159, %p160
      %p163 = scmp.ne.s32.totalorder %s146, %s162
      %p164 = scmp.eq.s32.totalorder %s23, 0
      %p165 = por %p163, %p164
      %p166 = scmp.le.s32.totalorder 1, %s17
      %p167 = scmp.lt.s32.totalorder %s17, 3
      %p168 = pnand %p166, %p167
      %p169 = pneg %p168
      // Predicated region
      $region9: #{tpu_custom_call.1} parent=5 // pred_check
        _
      $region10: #{tpu_custom_call.1} parent=5 // pred_check_branch
        %171 = sbr.rel (%p168) target = $region12
      $region11: #{tpu_custom_call.1} parent=5 // pred_region
        %s172 = ssub.s32 %s17, 1
        // Predicated region
        $region13: #{tpu_custom_call.1} parent=11 // pred_check
          %p173 = pneg %p76
        $region14: #{tpu_custom_call.1} parent=11 // pred_check_branch
          %175 = sbr.rel (%p173) target = $region16
        $region15: #{tpu_custom_call.1} parent=11 // pred_region
          %s177 = ssub.s32 2048, 2048
          %178 = vsyncadd [#allocation3], %s177
          %s179 = sshll.u32 [#allocation2], 4
          %s180 = int_to_ptr.vmem [resolvable:$true] %s179
          %185 = dma.hbm_to_vmem [thread:$0]  %s1, 2048, %s180, [#allocation3], 256, 256, 16
        $region16: #{tpu_custom_call.1} parent=11 // pred_fallthru
          _
        // Predicated region
        $region17: #{tpu_custom_call.1} parent=11 // pred_check
          %p186 = pneg %p130
        $region18: #{tpu_custom_call.1} parent=11 // pred_check_branch
          %188 = sbr.rel (%p186) target = $region20
        $region19: #{tpu_custom_call.1} parent=11 // pred_region
          %s189 = smul.u32 4, %s27
          %p190 = scmp.lt.s32.totalorder %s189, 3
          %s191 = scalar_select %p190, %s189, 3
          %s192 = smul.addr %s191, 8
          %s193 = scalar_lea.vmem %s3, %s192
          %s194 = smul.u32 4, %s27
        $region20: #{tpu_custom_call.1} parent=11 // pred_fallthru
          _
      $region12: #{tpu_custom_call.1} parent=5 // pred_fallthru
        _
      %p195 = scmp.lt.s32.totalorder %s17, 2
      // Predicated region
      $region21: #{tpu_custom_call.1} parent=5 // pred_check
        %p196 = pneg %p195
      $region22: #{tpu_custom_call.1} parent=5 // pred_check_branch
        %198 = sbr.rel (%p196) target = $region24
      $region23: #{tpu_custom_call.1} parent=5 // pred_region
        // Predicated region
        $region25: #{tpu_custom_call.1} parent=23 // pred_check
          %p199 = pneg %p49
        $region26: #{tpu_custom_call.1} parent=23 // pred_check_branch
          %201 = sbr.rel (%p199) target = $region28
        $region27: #{tpu_custom_call.1} parent=23 // pred_region
          %p202 = scmp.lt.s32.totalorder %s24, 1
          %s203 = scalar_select %p202, %s24, 1
          %s204 = smul.addr %s203, 2
          %s205 = smul.addr %s204, 8
          %s206 = scalar_lea.vmem %s0, %s205
        $region28: #{tpu_custom_call.1} parent=23 // pred_fallthru
          _
        // Predicated region
        $region29: #{tpu_custom_call.1} parent=23 // pred_check
          %p207 = pneg %p98
        $region30: #{tpu_custom_call.1} parent=23 // pred_check_branch
          %209 = sbr.rel (%p207) target = $region32
        $region31: #{tpu_custom_call.1} parent=23 // pred_region
          %s210 = sand.u32 %s88, 1
          %s211 = scalar_lea.sflag [#allocation6], %s210
          %s212 = sand.u32 %s88, 1
          %s213 = smul.addr %s212, 32
          %s214 = scalar_lea.vmem [#allocation5], %s213
          %s215 = smul.u32 4, %s25
          %s217 = ssub.s32 512, 512
          %218 = vsyncadd %s211, %s217
          %s219 = smul.addr %s24, 4
          %s220 = sadd.s32 %s215, %s219
          %s221 = smul.addr %s220, 128
          %s222 = scalar_lea.hbm %s2, %s221
          %s223 = sshll.u32 %s214, 4
          %s224 = int_to_ptr.vmem [resolvable:$true] %s223
          %229 = dma.hbm_to_vmem [thread:$0]  %s222, 512, %s224, %s211, 128, 128, 8
        $region32: #{tpu_custom_call.1} parent=23 // pred_fallthru
          _
      $region24: #{tpu_custom_call.1} parent=5 // pred_fallthru
        _
      %p230 = scmp.le.s32.totalorder 1, %s17
      %p231 = scmp.lt.s32.totalorder %s17, 3
      %p232 = pnand %p230, %p231
      %p233 = pneg %p232
      // Predicated region
      $region33: #{tpu_custom_call.1} parent=5 // pred_check
        _
      $region34: #{tpu_custom_call.1} parent=5 // pred_check_branch
        %235 = sbr.rel (%p232) target = $region36
      $region35: #{tpu_custom_call.1} parent=5 // pred_region
        %s236 = ssub.s32 %s17, 1
        // Predicated region
        $region37: #{tpu_custom_call.1} parent=35 // pred_check
          %p237 = pneg %p76
        $region38: #{tpu_custom_call.1} parent=35 // pred_check_branch
          %239 = sbr.rel (%p237) target = $region40
        $region39: #{tpu_custom_call.1} parent=35 // pred_region
          %240 = dma.done [#allocation3], 2048
        $region40: #{tpu_custom_call.1} parent=35 // pred_fallthru
          _
        %s241 = sand.u32 %s91, 1
        %s242 = scalar_lea.sflag [#allocation6], %s241
        %s243 = sand.u32 %s91, 1
        %s244 = smul.addr %s243, 32
        %s245 = scalar_lea.vmem [#allocation5], %s244
        // Predicated region
        $region41: #{tpu_custom_call.1} parent=35 // pred_check
          %p246 = pneg %p104
        $region42: #{tpu_custom_call.1} parent=35 // pred_check_branch
          %248 = sbr.rel (%p246) target = $region44
        $region43: #{tpu_custom_call.1} parent=35 // pred_region
          %249 = dma.done %s242, 512
        $region44: #{tpu_custom_call.1} parent=35 // pred_fallthru
          _
        %p250 = scmp.lt.s32.totalorder %s26, 1
        %s251 = scalar_select %p250, %s26, 1
        %s252 = smul.addr %s251, 2
        %s253 = smul.addr %s252, 8
        %s254 = scalar_lea.vmem %s0, %s253
        %p255 = pneg %p55
        %p256 = pneg %p52
        %p257 = pneg %p76
        %p258 = pneg %p73
        %s259 = sand.u32 %s91, 1
        %s260 = scalar_lea.sflag [#allocation6], %s259
        %s261 = sand.u32 %s91, 1
        %s262 = smul.addr %s261, 32
        %s263 = scalar_lea.vmem [#allocation5], %s262
        %p264 = pneg %p104
        %p265 = pneg %p101
        %s266 = smul.u32 4, %s27
        %p267 = scmp.lt.s32.totalorder %s266, 3
        %s268 = scalar_select %p267, %s266, 3
        %s269 = smul.addr %s268, 8
        %s270 = scalar_lea.vmem %s3, %s269
        %p271 = pneg %p130
        %p272 = pneg %p127
        %p273 = pneg %p158
        %p274 = pneg %p155
        %s275 = sand.u32 %s145, 1
        %s276 = scalar_lea.sflag [#allocation4], %s275
        %s277 = sand.u32 %s145, 1
        %s278 = smul.addr %s277, 64
        %s279 = scalar_lea.vmem [#allocation7], %s278
        %p280 = scmp.lt.s32.totalorder %s26, 1
        %s281 = scalar_select %p280, %s26, 1
        %s282 = smul.addr %s281, 2
        %s283 = smul.addr %s282, 8
        %s284 = scalar_lea.vmem %s0, %s283
        %s285 = smul.u32 4, %s27
        %s286 = smul.u32 4, %s27
        %p287 = scmp.lt.s32.totalorder %s286, 3
        %s288 = scalar_select %p287, %s286, 3
        %s289 = smul.addr %s288, 8
        %s290 = scalar_lea.vmem %s3, %s289
        %s291 = smul.u32 4, %s27
        %s292 = smul.u32 4, %s27
        %v293 = vld [vmem:[%s290] sm:$0xff]
        %v294 = vld [vmem:[%s290 + $0x8] sm:$0xff]
        %v295 = vld [vmem:[%s290 + $0x10] sm:$0xff]
        %v296 = vld [vmem:[%s290 + $0x18] sm:$0xff]
        %v297 = vld [vmem:[%s284] sm:$0xff]
        %v298 = vld [vmem:[%s284 + $0x8] sm:$0xff]
        %v299 = vld [vmem:[%s245] sm:$0xff]
        %v300 = vld [vmem:[%s245 + $0x8] sm:$0xff]
        %v301 = vld [vmem:[%s245 + $0x10] sm:$0xff]
        %v302 = vld [vmem:[%s245 + $0x18] sm:$0xff]
        %v303 = vld [vmem:[#allocation2] sm:$0xff]
        %v304 = vld [vmem:[#allocation2 + $0x8] sm:$0xff]
        %v305 = vld [vmem:[#allocation2 + $0x10] sm:$0xff]
        %v306 = vld [vmem:[#allocation2 + $0x18] sm:$0xff]
        %v307 = vld [vmem:[#allocation2 + $0x20] sm:$0xff]
        %v308 = vld [vmem:[#allocation2 + $0x28] sm:$0xff]
        %v309 = vld [vmem:[#allocation2 + $0x30] sm:$0xff]
        %v310 = vld [vmem:[#allocation2 + $0x38] sm:$0xff]
        %v311 = vld [vmem:[#allocation2 + $0x40] sm:$0xff]
        %v312 = vld [vmem:[#allocation2 + $0x48] sm:$0xff]
        %v313 = vld [vmem:[#allocation2 + $0x50] sm:$0xff]
        %v314 = vld [vmem:[#allocation2 + $0x58] sm:$0xff]
        %v315 = vld [vmem:[#allocation2 + $0x60] sm:$0xff]
        %v316 = vld [vmem:[#allocation2 + $0x68] sm:$0xff]
        %v317 = vld [vmem:[#allocation2 + $0x70] sm:$0xff]
        %v318 = vld [vmem:[#allocation2 + $0x78] sm:$0xff]
        %vm319 = vcmask 523264
        %v321 = vsel %vm319, %v299, 0
        %v324 = vsel %vm319, %v300, 0
        %v327 = vsel %vm319, %v301, 0
        %v330 = vsel %vm319, %v302, 0
        %v332 = vand.u32 %v304, 4294901760
        %333 = vmatprep.subr.mxu0 %v332
        %v334 = vand.u32 %v303, 4294901760
        %335 = vmatpush1.msra.mxu0 %v334
        %v336 = vand.u32 %v306, 4294901760
        %337 = vmatprep.subr.mxu0 %v336
        %v338 = vand.u32 %v305, 4294901760
        %339 = vmatpush1.msra.mxu0 %v338
        %v340 = vand.u32 %v308, 4294901760
        %341 = vmatprep.subr.mxu0 %v340
        %v342 = vand.u32 %v307, 4294901760
        %343 = vmatpush1.msra.mxu0 %v342
        %v344 = vand.u32 %v310, 4294901760
        %345 = vmatprep.subr.mxu0 %v344
        %v346 = vand.u32 %v309, 4294901760
        %347 = vmatpush1.msra.mxu0 %v346
        %v348 = vand.u32 %v312, 4294901760
        %349 = vmatprep.subr.mxu0 %v348
        %v350 = vand.u32 %v311, 4294901760
        %351 = vmatpush1.msra.mxu0 %v350
        %v352 = vand.u32 %v314, 4294901760
        %353 = vmatprep.subr.mxu0 %v352
        %v354 = vand.u32 %v313, 4294901760
        %355 = vmatpush1.msra.mxu0 %v354
        %v356 = vand.u32 %v316, 4294901760
        %357 = vmatprep.subr.mxu0 %v356
        %v358 = vand.u32 %v315, 4294901760
        %359 = vmatpush1.msra.mxu0 %v358
        %v360 = vand.u32 %v318, 4294901760
        %361 = vmatprep.subr.mxu0 %v360
        %v362 = vand.u32 %v317, 4294901760
        %363 = vmatpush1.msra.mxu0 %v362
        %364 = vmatprep.subr.mxu0 0.0
        %365 = vmatpush1.msra.mxu0 0.0
        %366 = vmatprep.subr.mxu0 0.0
        %367 = vmatpush1.msra.mxu0 0.0
        %368 = vmatprep.subr.mxu0 0.0
        %369 = vmatpush1.msra.mxu0 0.0
        %370 = vmatprep.subr.mxu0 0.0
        %371 = vmatpush1.msra.mxu0 0.0
        %372 = vmatprep.subr.mxu0 0.0
        %373 = vmatpush1.msra.mxu0 0.0
        %374 = vmatprep.subr.mxu0 0.0
        %375 = vmatpush1.msra.mxu0 0.0
        %376 = vmatprep.subr.mxu0 0.0
        %377 = vmatpush1.msra.mxu0 0.0
        %378 = vmatprep.subr.mxu0 0.0
        %379 = vmatpush1.msra.mxu0 0.0
        %380 = vmatprep.subr.mxu0 0.0
        %381 = vmatpush1.msra.mxu0 0.0
        %382 = vmatprep.subr.mxu0 0.0
        %383 = vmatpush1.msra.mxu0 0.0
        %384 = vmatprep.subr.mxu0 0.0
        %385 = vmatpush1.msra.mxu0 0.0
        %386 = vmatprep.subr.mxu0 0.0
        %387 = vmatpush1.msra.mxu0 0.0
        %388 = vmatprep.subr.mxu0 0.0
        %389 = vmatpush1.msra.mxu0 0.0
        %390 = vmatprep.subr.mxu0 0.0
        %391 = vmatpush1.msra.mxu0 0.0
        %392 = vmatprep.subr.mxu0 0.0
        %393 = vmatpush1.msra.mxu0 0.0
        %394 = vmatprep.subr.mxu0 0.0
        %395 = vmatpush1.msra.mxu0 0.0
        %396 = vmatprep.subr.mxu0 0.0
        %397 = vmatpush1.msra.mxu0 0.0
        %398 = vmatprep.subr.mxu0 0.0
        %399 = vmatpush1.msra.mxu0 0.0
        %400 = vmatprep.subr.mxu0 0.0
        %401 = vmatpush1.msra.mxu0 0.0
        %402 = vmatprep.subr.mxu0 0.0
        %403 = vmatpush1.msra.mxu0 0.0
        %404 = vmatprep.subr.mxu0 0.0
        %405 = vmatpush1.msra.mxu0 0.0
        %406 = vmatprep.subr.mxu0 0.0
        %407 = vmatpush1.msra.mxu0 0.0
        %408 = vmatprep.subr.mxu0 0.0
        %409 = vmatpush1.msra.mxu0 0.0
        %410 = vmatprep.subr.mxu0 0.0
        %411 = vmatpush1.msra.mxu0 0.0
        %412 = vmatprep.mubr.f32.mxu0 0.0
        %v413 = vand.u32 %v321, 4294901760
        %v414 = vsub.f32 %v321, %v413
        %v415 = vand.u32 %v414, 4294901760
        %v416 = vsub.f32 %v414, %v415
        %v417 = vand.u32 %v416, 4294901760
        %418 = vmatmul.mubr.f32.gmra.mrb[0].mxu0 %v417
        %v419 = vpop.f32.mrb[0].mxu0
        %v420 = vadd.f32 0.0, %v419
        %v421 = vpop.f32.mrb[0].mxu0
        %v422 = vadd.f32 0.0, %v421
        %423 = vmatprep.mubr.f32.mxu0 0.0
        %v424 = vand.u32 %v324, 4294901760
        %v425 = vsub.f32 %v324, %v424
        %v426 = vand.u32 %v425, 4294901760
        %v427 = vsub.f32 %v425, %v426
        %v428 = vand.u32 %v427, 4294901760
        %429 = vmatmul.mubr.f32.gmra.mrb[0].mxu0 %v428
        %v430 = vpop.f32.mrb[0].mxu0
        %v431 = vadd.f32 0.0, %v430
        %v432 = vpop.f32.mrb[0].mxu0
        %v433 = vadd.f32 0.0, %v432
        %434 = vmatprep.mubr.f32.mxu0 0.0
        %v435 = vand.u32 %v327, 4294901760
        %v436 = vsub.f32 %v327, %v435
        %v437 = vand.u32 %v436, 4294901760
        %v438 = vsub.f32 %v436, %v437
        %v439 = vand.u32 %v438, 4294901760
        %440 = vmatmul.mubr.f32.gmra.mrb[0].mxu0 %v439
        %v441 = vpop.f32.mrb[0].mxu0
        %v442 = vadd.f32 0.0, %v441
        %v443 = vpop.f32.mrb[0].mxu0
        %v444 = vadd.f32 0.0, %v443
        %445 = vmatprep.mubr.f32.mxu0 0.0
        %v446 = vand.u32 %v330, 4294901760
        %v447 = vsub.f32 %v330, %v446
        %v448 = vand.u32 %v447, 4294901760
        %v449 = vsub.f32 %v447, %v448
        %v450 = vand.u32 %v449, 4294901760
        %451 = vmatmul.mubr.f32.gmra.mrb[0].mxu0 %v450
        %v452 = vpop.f32.mrb[0].mxu0
        %v453 = vadd.f32 0.0, %v452
        %v454 = vpop.f32.mrb[0].mxu0
        %v455 = vadd.f32 0.0, %v454
        %456 = vdwg.mxu0
        %v457 = vand.u32 %v304, 4294901760
        %v458 = vsub.f32 %v304, %v457
        %v459 = vand.u32 %v458, 4294901760
        %v460 = vsub.f32 %v458, %v459
        %v461 = vand.u32 %v460, 4294901760
        %462 = vmatprep.subr.mxu0 %v461
        %v463 = vand.u32 %v303, 4294901760
        %v464 = vsub.f32 %v303, %v463
        %v465 = vand.u32 %v464, 4294901760
        %v466 = vsub.f32 %v464, %v465
        %v467 = vand.u32 %v466, 4294901760
        %468 = vmatpush1.msra.mxu0 %v467
        %v469 = vand.u32 %v306, 4294901760
        %v470 = vsub.f32 %v306, %v469
        %v471 = vand.u32 %v470, 4294901760
        %v472 = vsub.f32 %v470, %v471
        %v473 = vand.u32 %v472, 4294901760
        %474 = vmatprep.subr.mxu0 %v473
        %v475 = vand.u32 %v305, 4294901760
        %v476 = vsub.f32 %v305, %v475
        %v477 = vand.u32 %v476, 4294901760
        %v478 = vsub.f32 %v476, %v477
        %v479 = vand.u32 %v478, 4294901760
        %480 = vmatpush1.msra.mxu0 %v479
        %v481 = vand.u32 %v308, 4294901760
        %v482 = vsub.f32 %v308, %v481
        %v483 = vand.u32 %v482, 4294901760
        %v484 = vsub.f32 %v482, %v483
        %v485 = vand.u32 %v484, 4294901760
        %486 = vmatprep.subr.mxu0 %v485
        %v487 = vand.u32 %v307, 4294901760
        %v488 = vsub.f32 %v307, %v487
        %v489 = vand.u32 %v488, 4294901760
        %v490 = vsub.f32 %v488, %v489
        %v491 = vand.u32 %v490, 4294901760
        %492 = vmatpush1.msra.mxu0 %v491
        %v493 = vand.u32 %v310, 4294901760
        %v494 = vsub.f32 %v310, %v493
        %v495 = vand.u32 %v494, 4294901760
        %v496 = vsub.f32 %v494, %v495
        %v497 = vand.u32 %v496, 4294901760
        %498 = vmatprep.subr.mxu0 %v497
        %v499 = vand.u32 %v309, 4294901760
        %v500 = vsub.f32 %v309, %v499
        %v501 = vand.u32 %v500, 4294901760
        %v502 = vsub.f32 %v500, %v501
        %v503 = vand.u32 %v502, 4294901760
        %504 = vmatpush1.msra.mxu0 %v503
        %v505 = vand.u32 %v312, 4294901760
        %v506 = vsub.f32 %v312, %v505
        %v507 = vand.u32 %v506, 4294901760
        %v508 = vsub.f32 %v506, %v507
        %v509 = vand.u32 %v508, 4294901760
        %510 = vmatprep.subr.mxu0 %v509
        %v511 = vand.u32 %v311, 4294901760
        %v512 = vsub.f32 %v311, %v511
        %v513 = vand.u32 %v512, 4294901760
        %v514 = vsub.f32 %v512, %v513
        %v515 = vand.u32 %v514, 4294901760
        %516 = vmatpush1.msra.mxu0 %v515
        %v517 = vand.u32 %v314, 4294901760
        %v518 = vsub.f32 %v314, %v517
        %v519 = vand.u32 %v518, 4294901760
        %v520 = vsub.f32 %v518, %v519
        %v521 = vand.u32 %v520, 4294901760
        %522 = vmatprep.subr.mxu0 %v521
        %v523 = vand.u32 %v313, 4294901760
        %v524 = vsub.f32 %v313, %v523
        %v525 = vand.u32 %v524, 4294901760
        %v526 = vsub.f32 %v524, %v525
        %v527 = vand.u32 %v526, 4294901760
        %528 = vmatpush1.msra.mxu0 %v527
        %v529 = vand.u32 %v316, 4294901760
        %v530 = vsub.f32 %v316, %v529
        %v531 = vand.u32 %v530, 4294901760
        %v532 = vsub.f32 %v530, %v531
        %v533 = vand.u32 %v532, 4294901760
        %534 = vmatprep.subr.mxu0 %v533
        %v535 = vand.u32 %v315, 4294901760
        %v536 = vsub.f32 %v315, %v535
        %v537 = vand.u32 %v536, 4294901760
        %v538 = vsub.f32 %v536, %v537
        %v539 = vand.u32 %v538, 4294901760
        %540 = vmatpush1.msra.mxu0 %v539
        %v541 = vand.u32 %v318, 4294901760
        %v542 = vsub.f32 %v318, %v541
        %v543 = vand.u32 %v542, 4294901760
        %v544 = vsub.f32 %v542, %v543
        %v545 = vand.u32 %v544, 4294901760
        %546 = vmatprep.subr.mxu0 %v545
        %v547 = vand.u32 %v317, 4294901760
        %v548 = vsub.f32 %v317, %v547
        %v549 = vand.u32 %v548, 4294901760
        %v550 = vsub.f32 %v548, %v549
        %v551 = vand.u32 %v550, 4294901760
        %552 = vmatpush1.msra.mxu0 %v551
        %553 = vmatprep.subr.mxu0 0.0
        %554 = vmatpush1.msra.mxu0 0.0
        %555 = vmatprep.subr.mxu0 0.0
        %556 = vmatpush1.msra.mxu0 0.0
        %557 = vmatprep.subr.mxu0 0.0
        %558 = vmatpush1.msra.mxu0 0.0
        %559 = vmatprep.subr.mxu0 0.0
        %560 = vmatpush1.msra.mxu0 0.0
        %561 = vmatprep.subr.mxu0 0.0
        %562 = vmatpush1.msra.mxu0 0.0
        %563 = vmatprep.subr.mxu0 0.0
        %564 = vmatpush1.msra.mxu0 0.0
        %565 = vmatprep.subr.mxu0 0.0
        %566 = vmatpush1.msra.mxu0 0.0
        %567 = vmatprep.subr.mxu0 0.0
        %568 = vmatpush1.msra.mxu0 0.0
        %569 = vmatprep.subr.mxu0 0.0
        %570 = vmatpush1.msra.mxu0 0.0
        %571 = vmatprep.subr.mxu0 0.0
        %572 = vmatpush1.msra.mxu0 0.0
        %573 = vmatprep.subr.mxu0 0.0
        %574 = vmatpush1.msra.mxu0 0.0
        %575 = vmatprep.subr.mxu0 0.0
        %576 = vmatpush1.msra.mxu0 0.0
        %577 = vmatprep.subr.mxu0 0.0
        %578 = vmatpush1.msra.mxu0 0.0
        %579 = vmatprep.subr.mxu0 0.0
        %580 = vmatpush1.msra.mxu0 0.0
        %581 = vmatprep.subr.mxu0 0.0
        %582 = vmatpush1.msra.mxu0 0.0
        %583 = vmatprep.subr.mxu0 0.0
        %584 = vmatpush1.msra.mxu0 0.0
        %585 = vmatprep.subr.mxu0 0.0
        %586 = vmatpush1.msra.mxu0 0.0
        %587 = vmatprep.subr.mxu0 0.0
        %588 = vmatpush1.msra.mxu0 0.0
        %589 = vmatprep.subr.mxu0 0.0
        %590 = vmatpush1.msra.mxu0 0.0
        %591 = vmatprep.subr.mxu0 0.0
        %592 = vmatpush1.msra.mxu0 0.0
        %593 = vmatprep.subr.mxu0 0.0
        %594 = vmatpush1.msra.mxu0 0.0
        %595 = vmatprep.subr.mxu0 0.0
        %596 = vmatpush1.msra.mxu0 0.0
        %597 = vmatprep.subr.mxu0 0.0
        %598 = vmatpush1.msra.mxu0 0.0
        %599 = vmatprep.subr.mxu0 0.0
        %600 = vmatpush1.msra.mxu0 0.0
        %601 = vmatprep.mubr.f32.mxu0 0.0
        %v602 = vand.u32 %v321, 4294901760
        %603 = vmatmul.mubr.f32.gmra.mrb[0].mxu0 %v602
        %v604 = vpop.f32.mrb[0].mxu0
        %v605 = vadd.f32 %v420, %v604
        %v606 = vpop.f32.mrb[0].mxu0
        %v607 = vadd.f32 %v422, %v606
        %608 = vmatprep.mubr.f32.mxu0 0.0
        %v609 = vand.u32 %v324, 4294901760
        %610 = vmatmul.mubr.f32.gmra.mrb[0].mxu0 %v609
        %v611 = vpop.f32.mrb[0].mxu0
        %v612 = vadd.f32 %v431, %v611
        %v613 = vpop.f32.mrb[0].mxu0
        %v614 = vadd.f32 %v433, %v613
        %615 = vmatprep.mubr.f32.mxu0 0.0
        %v616 = vand.u32 %v327, 4294901760
        %617 = vmatmul.mubr.f32.gmra.mrb[0].mxu0 %v616
        %v618 = vpop.f32.mrb[0].mxu0
        %v619 = vadd.f32 %v442, %v618
        %v620 = vpop.f32.mrb[0].mxu0
        %v621 = vadd.f32 %v444, %v620
        %622 = vmatprep.mubr.f32.mxu0 0.0
        %v623 = vand.u32 %v330, 4294901760
        %624 = vmatmul.mubr.f32.gmra.mrb[0].mxu0 %v623
        %v625 = vpop.f32.mrb[0].mxu0
        %v626 = vadd.f32 %v453, %v625
        %v627 = vpop.f32.mrb[0].mxu0
        %v628 = vadd.f32 %v455, %v627
        %629 = vdwg.mxu0
        %v630 = vand.u32 %v304, 4294901760
        %v631 = vsub.f32 %v304, %v630
        %632 = vmatprep.subr.mxu0 %v631
        %v633 = vand.u32 %v303, 4294901760
        %v634 = vsub.f32 %v303, %v633
        %635 = vmatpush1.msra.mxu0 %v634
        %v636 = vand.u32 %v306, 4294901760
        %v637 = vsub.f32 %v306, %v636
        %638 = vmatprep.subr.mxu0 %v637
        %v639 = vand.u32 %v305, 4294901760
        %v640 = vsub.f32 %v305, %v639
        %641 = vmatpush1.msra.mxu0 %v640
        %v642 = vand.u32 %v308, 4294901760
        %v643 = vsub.f32 %v308, %v642
        %644 = vmatprep.subr.mxu0 %v643
        %v645 = vand.u32 %v307, 4294901760
        %v646 = vsub.f32 %v307, %v645
        %647 = vmatpush1.msra.mxu0 %v646
        %v648 = vand.u32 %v310, 4294901760
        %v649 = vsub.f32 %v310, %v648
        %650 = vmatprep.subr.mxu0 %v649
        %v651 = vand.u32 %v309, 4294901760
        %v652 = vsub.f32 %v309, %v651
        %653 = vmatpush1.msra.mxu0 %v652
        %v654 = vand.u32 %v312, 4294901760
        %v655 = vsub.f32 %v312, %v654
        %656 = vmatprep.subr.mxu0 %v655
        %v657 = vand.u32 %v311, 4294901760
        %v658 = vsub.f32 %v311, %v657
        %659 = vmatpush1.msra.mxu0 %v658
        %v660 = vand.u32 %v314, 4294901760
        %v661 = vsub.f32 %v314, %v660
        %662 = vmatprep.subr.mxu0 %v661
        %v663 = vand.u32 %v313, 4294901760
        %v664 = vsub.f32 %v313, %v663
        %665 = vmatpush1.msra.mxu0 %v664
        %v666 = vand.u32 %v316, 4294901760
        %v667 = vsub.f32 %v316, %v666
        %668 = vmatprep.subr.mxu0 %v667
        %v669 = vand.u32 %v315, 4294901760
        %v670 = vsub.f32 %v315, %v669
        %671 = vmatpush1.msra.mxu0 %v670
        %v672 = vand.u32 %v318, 4294901760
        %v673 = vsub.f32 %v318, %v672
        %674 = vmatprep.subr.mxu0 %v673
        %v675 = vand.u32 %v317, 4294901760
        %v676 = vsub.f32 %v317, %v675
        %677 = vmatpush1.msra.mxu0 %v676
        %678 = vmatprep.subr.mxu0 0.0
        %679 = vmatpush1.msra.mxu0 0.0
        %680 = vmatprep.subr.mxu0 0.0
        %681 = vmatpush1.msra.mxu0 0.0
        %682 = vmatprep.subr.mxu0 0.0
        %683 = vmatpush1.msra.mxu0 0.0
        %684 = vmatprep.subr.mxu0 0.0
        %685 = vmatpush1.msra.mxu0 0.0
        %686 = vmatprep.subr.mxu0 0.0
        %687 = vmatpush1.msra.mxu0 0.0
        %688 = vmatprep.subr.mxu0 0.0
        %689 = vmatpush1.msra.mxu0 0.0
        %690 = vmatprep.subr.mxu0 0.0
        %691 = vmatpush1.msra.mxu0 0.0
        %692 = vmatprep.subr.mxu0 0.0
        %693 = vmatpush1.msra.mxu0 0.0
        %694 = vmatprep.subr.mxu0 0.0
        %695 = vmatpush1.msra.mxu0 0.0
        %696 = vmatprep.subr.mxu0 0.0
        %697 = vmatpush1.msra.mxu0 0.0
        %698 = vmatprep.subr.mxu0 0.0
        %699 = vmatpush1.msra.mxu0 0.0
        %700 = vmatprep.subr.mxu0 0.0
        %701 = vmatpush1.msra.mxu0 0.0
        %702 = vmatprep.subr.mxu0 0.0
        %703 = vmatpush1.msra.mxu0 0.0
        %704 = vmatprep.subr.mxu0 0.0
        %705 = vmatpush1.msra.mxu0 0.0
        %706 = vmatprep.subr.mxu0 0.0
        %707 = vmatpush1.msra.mxu0 0.0
        %708 = vmatprep.subr.mxu0 0.0
        %709 = vmatpush1.msra.mxu0 0.0
        %710 = vmatprep.subr.mxu0 0.0
        %711 = vmatpush1.msra.mxu0 0.0
        %712 = vmatprep.subr.mxu0 0.0
        %713 = vmatpush1.msra.mxu0 0.0
        %714 = vmatprep.subr.mxu0 0.0
        %715 = vmatpush1.msra.mxu0 0.0
        %716 = vmatprep.subr.mxu0 0.0
        %717 = vmatpush1.msra.mxu0 0.0
        %718 = vmatprep.subr.mxu0 0.0
        %719 = vmatpush1.msra.mxu0 0.0
        %720 = vmatprep.subr.mxu0 0.0
        %721 = vmatpush1.msra.mxu0 0.0
        %722 = vmatprep.subr.mxu0 0.0
        %723 = vmatpush1.msra.mxu0 0.0
        %724 = vmatprep.subr.mxu0 0.0
        %725 = vmatpush1.msra.mxu0 0.0
        %726 = vmatprep.mubr.f32.mxu0 0.0
        %v727 = vand.u32 %v321, 4294901760
        %v728 = vsub.f32 %v321, %v727
        %729 = vmatmul.mubr.f32.gmra.mrb[0].mxu0 %v728
        %v730 = vpop.f32.mrb[0].mxu0
        %v731 = vadd.f32 %v605, %v730
        %v732 = vpop.f32.mrb[0].mxu0
        %v733 = vadd.f32 %v607, %v732
        %734 = vmatprep.mubr.f32.mxu0 0.0
        %v735 = vand.u32 %v324, 4294901760
        %v736 = vsub.f32 %v324, %v735
        %737 = vmatmul.mubr.f32.gmra.mrb[0].mxu0 %v736
        %v738 = vpop.f32.mrb[0].mxu0
        %v739 = vadd.f32 %v612, %v738
        %v740 = vpop.f32.mrb[0].mxu0
        %v741 = vadd.f32 %v614, %v740
        %742 = vmatprep.mubr.f32.mxu0 0.0
        %v743 = vand.u32 %v327, 4294901760
        %v744 = vsub.f32 %v327, %v743
        %745 = vmatmul.mubr.f32.gmra.mrb[0].mxu0 %v744
        %v746 = vpop.f32.mrb[0].mxu0
        %v747 = vadd.f32 %v619, %v746
        %v748 = vpop.f32.mrb[0].mxu0
        %v749 = vadd.f32 %v621, %v748
        %750 = vmatprep.mubr.f32.mxu0 0.0
        %v751 = vand.u32 %v330, 4294901760
        %v752 = vsub.f32 %v330, %v751
        %753 = vmatmul.mubr.f32.gmra.mrb[0].mxu0 %v752
        %v754 = vpop.f32.mrb[0].mxu0
        %v755 = vadd.f32 %v626, %v754
        %v756 = vpop.f32.mrb[0].mxu0
        %v757 = vadd.f32 %v628, %v756
        %758 = vdwg.mxu0
        %v759 = vand.u32 %v304, 4294901760
        %760 = vmatprep.subr.mxu0 %v759
        %v761 = vand.u32 %v303, 4294901760
        %762 = vmatpush1.msra.mxu0 %v761
        %v763 = vand.u32 %v306, 4294901760
        %764 = vmatprep.subr.mxu0 %v763
        %v765 = vand.u32 %v305, 4294901760
        %766 = vmatpush1.msra.mxu0 %v765
        %v767 = vand.u32 %v308, 4294901760
        %768 = vmatprep.subr.mxu0 %v767
        %v769 = vand.u32 %v307, 4294901760
        %770 = vmatpush1.msra.mxu0 %v769
        %v771 = vand.u32 %v310, 4294901760
        %772 = vmatprep.subr.mxu0 %v771
        %v773 = vand.u32 %v309, 4294901760
        %774 = vmatpush1.msra.mxu0 %v773
        %v775 = vand.u32 %v312, 4294901760
        %776 = vmatprep.subr.mxu0 %v775
        %v777 = vand.u32 %v311, 4294901760
        %778 = vmatpush1.msra.mxu0 %v777
        %v779 = vand.u32 %v314, 4294901760
        %780 = vmatprep.subr.mxu0 %v779
        %v781 = vand.u32 %v313, 4294901760
        %782 = vmatpush1.msra.mxu0 %v781
        %v783 = vand.u32 %v316, 4294901760
        %784 = vmatprep.subr.mxu0 %v783
        %v785 = vand.u32 %v315, 4294901760
        %786 = vmatpush1.msra.mxu0 %v785
        %v787 = vand.u32 %v318, 4294901760
        %788 = vmatprep.subr.mxu0 %v787
        %v789 = vand.u32 %v317, 4294901760
        %790 = vmatpush1.msra.mxu0 %v789
        %791 = vmatprep.subr.mxu0 0.0
        %792 = vmatpush1.msra.mxu0 0.0
        %793 = vmatprep.subr.mxu0 0.0
        %794 = vmatpush1.msra.mxu0 0.0
        %795 = vmatprep.subr.mxu0 0.0
        %796 = vmatpush1.msra.mxu0 0.0
        %797 = vmatprep.subr.mxu0 0.0
        %798 = vmatpush1.msra.mxu0 0.0
        %799 = vmatprep.subr.mxu0 0.0
        %800 = vmatpush1.msra.mxu0 0.0
        %801 = vmatprep.subr.mxu0 0.0
        %802 = vmatpush1.msra.mxu0 0.0
        %803 = vmatprep.subr.mxu0 0.0
        %804 = vmatpush1.msra.mxu0 0.0
        %805 = vmatprep.subr.mxu0 0.0
        %806 = vmatpush1.msra.mxu0 0.0
        %807 = vmatprep.subr.mxu0 0.0
        %808 = vmatpush1.msra.mxu0 0.0
        %809 = vmatprep.subr.mxu0 0.0
        %810 = vmatpush1.msra.mxu0 0.0
        %811 = vmatprep.subr.mxu0 0.0
        %812 = vmatpush1.msra.mxu0 0.0
        %813 = vmatprep.subr.mxu0 0.0
        %814 = vmatpush1.msra.mxu0 0.0
        %815 = vmatprep.subr.mxu0 0.0
        %816 = vmatpush1.msra.mxu0 0.0
        %817 = vmatprep.subr.mxu0 0.0
        %818 = vmatpush1.msra.mxu0 0.0
        %819 = vmatprep.subr.mxu0 0.0
        %820 = vmatpush1.msra.mxu0 0.0
        %821 = vmatprep.subr.mxu0 0.0
        %822 = vmatpush1.msra.mxu0 0.0
        %823 = vmatprep.subr.mxu0 0.0
        %824 = vmatpush1.msra.mxu0 0.0
        %825 = vmatprep.subr.mxu0 0.0
        %826 = vmatpush1.msra.mxu0 0.0
        %827 = vmatprep.subr.mxu0 0.0
        %828 = vmatpush1.msra.mxu0 0.0
        %829 = vmatprep.subr.mxu0 0.0
        %830 = vmatpush1.msra.mxu0 0.0
        %831 = vmatprep.subr.mxu0 0.0
        %832 = vmatpush1.msra.mxu0 0.0
        %833 = vmatprep.subr.mxu0 0.0
        %834 = vmatpush1.msra.mxu0 0.0
        %835 = vmatprep.subr.mxu0 0.0
        %836 = vmatpush1.msra.mxu0 0.0
        %837 = vmatprep.subr.mxu0 0.0
        %838 = vmatpush1.msra.mxu0 0.0
        %839 = vmatprep.mubr.f32.mxu0 0.0
        %v840 = vand.u32 %v321, 4294901760
        %v841 = vsub.f32 %v321, %v840
        %v842 = vand.u32 %v841, 4294901760
        %843 = vmatmul.mubr.f32.gmra.mrb[0].mxu0 %v842
        %v844 = vpop.f32.mrb[0].mxu0
        %v845 = vadd.f32 %v731, %v844
        %v846 = vpop.f32.mrb[0].mxu0
        %v847 = vadd.f32 %v733, %v846
        %848 = vmatprep.mubr.f32.mxu0 0.0
        %v849 = vand.u32 %v324, 4294901760
        %v850 = vsub.f32 %v324, %v849
        %v851 = vand.u32 %v850, 4294901760
        %852 = vmatmul.mubr.f32.gmra.mrb[0].mxu0 %v851
        %v853 = vpop.f32.mrb[0].mxu0
        %v854 = vadd.f32 %v739, %v853
        %v855 = vpop.f32.mrb[0].mxu0
        %v856 = vadd.f32 %v741, %v855
        %857 = vmatprep.mubr.f32.mxu0 0.0
        %v858 = vand.u32 %v327, 4294901760
        %v859 = vsub.f32 %v327, %v858
        %v860 = vand.u32 %v859, 4294901760
        %861 = vmatmul.mubr.f32.gmra.mrb[0].mxu0 %v860
        %v862 = vpop.f32.mrb[0].mxu0
        %v863 = vadd.f32 %v747, %v862
        %v864 = vpop.f32.mrb[0].mxu0
        %v865 = vadd.f32 %v749, %v864
        %866 = vmatprep.mubr.f32.mxu0 0.0
        %v867 = vand.u32 %v330, 4294901760
        %v868 = vsub.f32 %v330, %v867
        %v869 = vand.u32 %v868, 4294901760
        %870 = vmatmul.mubr.f32.gmra.mrb[0].mxu0 %v869
        %v871 = vpop.f32.mrb[0].mxu0
        %v872 = vadd.f32 %v755, %v871
        %v873 = vpop.f32.mrb[0].mxu0
        %v874 = vadd.f32 %v757, %v873
        %875 = vdwg.mxu0
        %v876 = vand.u32 %v304, 4294901760
        %v877 = vsub.f32 %v304, %v876
        %v878 = vand.u32 %v877, 4294901760
        %879 = vmatprep.subr.mxu0 %v878
        %v880 = vand.u32 %v303, 4294901760
        %v881 = vsub.f32 %v303, %v880
        %v882 = vand.u32 %v881, 4294901760
        %883 = vmatpush1.msra.mxu0 %v882
        %v884 = vand.u32 %v306, 4294901760
        %v885 = vsub.f32 %v306, %v884
        %v886 = vand.u32 %v885, 4294901760
        %887 = vmatprep.subr.mxu0 %v886
        %v888 = vand.u32 %v305, 4294901760
        %v889 = vsub.f32 %v305, %v888
        %v890 = vand.u32 %v889, 4294901760
        %891 = vmatpush1.msra.mxu0 %v890
        %v892 = vand.u32 %v308, 4294901760
        %v893 = vsub.f32 %v308, %v892
        %v894 = vand.u32 %v893, 4294901760
        %895 = vmatprep.subr.mxu0 %v894
        %v896 = vand.u32 %v307, 4294901760
        %v897 = vsub.f32 %v307, %v896
        %v898 = vand.u32 %v897, 4294901760
        %899 = vmatpush1.msra.mxu0 %v898
        %v900 = vand.u32 %v310, 4294901760
        %v901 = vsub.f32 %v310, %v900
        %v902 = vand.u32 %v901, 4294901760
        %903 = vmatprep.subr.mxu0 %v902
        %v904 = vand.u32 %v309, 4294901760
        %v905 = vsub.f32 %v309, %v904
        %v906 = vand.u32 %v905, 4294901760
        %907 = vmatpush1.msra.mxu0 %v906
        %v908 = vand.u32 %v312, 4294901760
        %v909 = vsub.f32 %v312, %v908
        %v910 = vand.u32 %v909, 4294901760
        %911 = vmatprep.subr.mxu0 %v910
        %v912 = vand.u32 %v311, 4294901760
        %v913 = vsub.f32 %v311, %v912
        %v914 = vand.u32 %v913, 4294901760
        %915 = vmatpush1.msra.mxu0 %v914
        %v916 = vand.u32 %v314, 4294901760
        %v917 = vsub.f32 %v314, %v916
        %v918 = vand.u32 %v917, 4294901760
        %919 = vmatprep.subr.mxu0 %v918
        %v920 = vand.u32 %v313, 4294901760
        %v921 = vsub.f32 %v313, %v920
        %v922 = vand.u32 %v921, 4294901760
        %923 = vmatpush1.msra.mxu0 %v922
        %v924 = vand.u32 %v316, 4294901760
        %v925 = vsub.f32 %v316, %v924
        %v926 = vand.u32 %v925, 4294901760
        %927 = vmatprep.subr.mxu0 %v926
        %v928 = vand.u32 %v315, 4294901760
        %v929 = vsub.f32 %v315, %v928
        %v930 = vand.u32 %v929, 4294901760
        %931 = vmatpush1.msra.mxu0 %v930
        %v932 = vand.u32 %v318, 4294901760
        %v933 = vsub.f32 %v318, %v932
        %v934 = vand.u32 %v933, 4294901760
        %935 = vmatprep.subr.mxu0 %v934
        %v936 = vand.u32 %v317, 4294901760
        %v937 = vsub.f32 %v317, %v936
        %v938 = vand.u32 %v937, 4294901760
        %939 = vmatpush1.msra.mxu0 %v938
        %940 = vmatprep.subr.mxu0 0.0
        %941 = vmatpush1.msra.mxu0 0.0
        %942 = vmatprep.subr.mxu0 0.0
        %943 = vmatpush1.msra.mxu0 0.0
        %944 = vmatprep.subr.mxu0 0.0
        %945 = vmatpush1.msra.mxu0 0.0
        %946 = vmatprep.subr.mxu0 0.0
        %947 = vmatpush1.msra.mxu0 0.0
        %948 = vmatprep.subr.mxu0 0.0
        %949 = vmatpush1.msra.mxu0 0.0
        %950 = vmatprep.subr.mxu0 0.0
        %951 = vmatpush1.msra.mxu0 0.0
        %952 = vmatprep.subr.mxu0 0.0
        %953 = vmatpush1.msra.mxu0 0.0
        %954 = vmatprep.subr.mxu0 0.0
        %955 = vmatpush1.msra.mxu0 0.0
        %956 = vmatprep.subr.mxu0 0.0
        %957 = vmatpush1.msra.mxu0 0.0
        %958 = vmatprep.subr.mxu0 0.0
        %959 = vmatpush1.msra.mxu0 0.0
        %960 = vmatprep.subr.mxu0 0.0
        %961 = vmatpush1.msra.mxu0 0.0
        %962 = vmatprep.subr.mxu0 0.0
        %963 = vmatpush1.msra.mxu0 0.0
        %964 = vmatprep.subr.mxu0 0.0
        %965 = vmatpush1.msra.mxu0 0.0
        %966 = vmatprep.subr.mxu0 0.0
        %967 = vmatpush1.msra.mxu0 0.0
        %968 = vmatprep.subr.mxu0 0.0
        %969 = vmatpush1.msra.mxu0 0.0
        %970 = vmatprep.subr.mxu0 0.0
        %971 = vmatpush1.msra.mxu0 0.0
        %972 = vmatprep.subr.mxu0 0.0
        %973 = vmatpush1.msra.mxu0 0.0
        %974 = vmatprep.subr.mxu0 0.0
        %975 = vmatpush1.msra.mxu0 0.0
        %976 = vmatprep.subr.mxu0 0.0
        %977 = vmatpush1.msra.mxu0 0.0
        %978 = vmatprep.subr.mxu0 0.0
        %979 = vmatpush1.msra.mxu0 0.0
        %980 = vmatprep.subr.mxu0 0.0
        %981 = vmatpush1.msra.mxu0 0.0
        %982 = vmatprep.subr.mxu0 0.0
        %983 = vmatpush1.msra.mxu0 0.0
        %984 = vmatprep.subr.mxu0 0.0
        %985 = vmatpush1.msra.mxu0 0.0
        %986 = vmatprep.subr.mxu0 0.0
        %987 = vmatpush1.msra.mxu0 0.0
        %988 = vmatprep.mubr.f32.mxu0 0.0
        %v989 = vand.u32 %v321, 4294901760
        %990 = vmatmul.mubr.f32.gmra.mrb[0].mxu0 %v989
        %v991 = vpop.f32.mrb[0].mxu0
        %v992 = vadd.f32 %v845, %v991
        %v993 = vpop.f32.mrb[0].mxu0
        %v994 = vadd.f32 %v847, %v993
        %995 = vmatprep.mubr.f32.mxu0 0.0
        %v996 = vand.u32 %v324, 4294901760
        %997 = vmatmul.mubr.f32.gmra.mrb[0].mxu0 %v996
        %v998 = vpop.f32.mrb[0].mxu0
        %v999 = vadd.f32 %v854, %v998
        %v1000 = vpop.f32.mrb[0].mxu0
        %v1001 = vadd.f32 %v856, %v1000
        %1002 = vmatprep.mubr.f32.mxu0 0.0
        %v1003 = vand.u32 %v327, 4294901760
        %1004 = vmatmul.mubr.f32.gmra.mrb[0].mxu0 %v1003
        %v1005 = vpop.f32.mrb[0].mxu0
        %v1006 = vadd.f32 %v863, %v1005
        %v1007 = vpop.f32.mrb[0].mxu0
        %v1008 = vadd.f32 %v865, %v1007
        %1009 = vmatprep.mubr.f32.mxu0 0.0
        %v1010 = vand.u32 %v330, 4294901760
        %1011 = vmatmul.mubr.f32.gmra.mrb[0].mxu0 %v1010
        %v1012 = vpop.f32.mrb[0].mxu0
        %v1013 = vadd.f32 %v872, %v1012
        %v1014 = vpop.f32.mrb[0].mxu0
        %v1015 = vadd.f32 %v874, %v1014
        %1016 = vdwg.mxu0
        %v1017 = vand.u32 %v304, 4294901760
        %1018 = vmatprep.subr.mxu0 %v1017
        %v1019 = vand.u32 %v303, 4294901760
        %1020 = vmatpush1.msra.mxu0 %v1019
        %v1021 = vand.u32 %v306, 4294901760
        %1022 = vmatprep.subr.mxu0 %v1021
        %v1023 = vand.u32 %v305, 4294901760
        %1024 = vmatpush1.msra.mxu0 %v1023
        %v1025 = vand.u32 %v308, 4294901760
        %1026 = vmatprep.subr.mxu0 %v1025
        %v1027 = vand.u32 %v307, 4294901760
        %1028 = vmatpush1.msra.mxu0 %v1027
        %v1029 = vand.u32 %v310, 4294901760
        %1030 = vmatprep.subr.mxu0 %v1029
        %v1031 = vand.u32 %v309, 4294901760
        %1032 = vmatpush1.msra.mxu0 %v1031
        %v1033 = vand.u32 %v312, 4294901760
        %1034 = vmatprep.subr.mxu0 %v1033
        %v1035 = vand.u32 %v311, 4294901760
        %1036 = vmatpush1.msra.mxu0 %v1035
        %v1037 = vand.u32 %v314, 4294901760
        %1038 = vmatprep.subr.mxu0 %v1037
        %v1039 = vand.u32 %v313, 4294901760
        %1040 = vmatpush1.msra.mxu0 %v1039
        %v1041 = vand.u32 %v316, 4294901760
        %1042 = vmatprep.subr.mxu0 %v1041
        %v1043 = vand.u32 %v315, 4294901760
        %1044 = vmatpush1.msra.mxu0 %v1043
        %v1045 = vand.u32 %v318, 4294901760
        %1046 = vmatprep.subr.mxu0 %v1045
        %v1047 = vand.u32 %v317, 4294901760
        %1048 = vmatpush1.msra.mxu0 %v1047
        %1049 = vmatprep.subr.mxu0 0.0
        %1050 = vmatpush1.msra.mxu0 0.0
        %1051 = vmatprep.subr.mxu0 0.0
        %1052 = vmatpush1.msra.mxu0 0.0
        %1053 = vmatprep.subr.mxu0 0.0
        %1054 = vmatpush1.msra.mxu0 0.0
        %1055 = vmatprep.subr.mxu0 0.0
        %1056 = vmatpush1.msra.mxu0 0.0
        %1057 = vmatprep.subr.mxu0 0.0
        %1058 = vmatpush1.msra.mxu0 0.0
        %1059 = vmatprep.subr.mxu0 0.0
        %1060 = vmatpush1.msra.mxu0 0.0
        %1061 = vmatprep.subr.mxu0 0.0
        %1062 = vmatpush1.msra.mxu0 0.0
        %1063 = vmatprep.subr.mxu0 0.0
        %1064 = vmatpush1.msra.mxu0 0.0
        %1065 = vmatprep.subr.mxu0 0.0
        %1066 = vmatpush1.msra.mxu0 0.0
        %1067 = vmatprep.subr.mxu0 0.0
        %1068 = vmatpush1.msra.mxu0 0.0
        %1069 = vmatprep.subr.mxu0 0.0
        %1070 = vmatpush1.msra.mxu0 0.0
        %1071 = vmatprep.subr.mxu0 0.0
        %1072 = vmatpush1.msra.mxu0 0.0
        %1073 = vmatprep.subr.mxu0 0.0
        %1074 = vmatpush1.msra.mxu0 0.0
        %1075 = vmatprep.subr.mxu0 0.0
        %1076 = vmatpush1.msra.mxu0 0.0
        %1077 = vmatprep.subr.mxu0 0.0
        %1078 = vmatpush1.msra.mxu0 0.0
        %1079 = vmatprep.subr.mxu0 0.0
        %1080 = vmatpush1.msra.mxu0 0.0
        %1081 = vmatprep.subr.mxu0 0.0
        %1082 = vmatpush1.msra.mxu0 0.0
        %1083 = vmatprep.subr.mxu0 0.0
        %1084 = vmatpush1.msra.mxu0 0.0
        %1085 = vmatprep.subr.mxu0 0.0
        %1086 = vmatpush1.msra.mxu0 0.0
        %1087 = vmatprep.subr.mxu0 0.0
        %1088 = vmatpush1.msra.mxu0 0.0
        %1089 = vmatprep.subr.mxu0 0.0
        %1090 = vmatpush1.msra.mxu0 0.0
        %1091 = vmatprep.subr.mxu0 0.0
        %1092 = vmatpush1.msra.mxu0 0.0
        %1093 = vmatprep.subr.mxu0 0.0
        %1094 = vmatpush1.msra.mxu0 0.0
        %1095 = vmatprep.subr.mxu0 0.0
        %1096 = vmatpush1.msra.mxu0 0.0
        %1097 = vmatprep.mubr.f32.mxu0 0.0
        %v1098 = vand.u32 %v321, 4294901760
        %1099 = vmatmul.mubr.f32.gmra.mrb[0].mxu0 %v1098
        %v1100 = vpop.f32.mrb[0].mxu0
        %v1101 = vadd.f32 %v992, %v1100
        %v1102 = vpop.f32.mrb[0].mxu0
        %v1103 = vadd.f32 %v994, %v1102
        %1104 = vmatprep.mubr.f32.mxu0 0.0
        %v1105 = vand.u32 %v324, 4294901760
        %1106 = vmatmul.mubr.f32.gmra.mrb[0].mxu0 %v1105
        %v1107 = vpop.f32.mrb[0].mxu0
        %v1108 = vadd.f32 %v999, %v1107
        %v1109 = vpop.f32.mrb[0].mxu0
        %v1110 = vadd.f32 %v1001, %v1109
        %1111 = vmatprep.mubr.f32.mxu0 0.0
        %v1112 = vand.u32 %v327, 4294901760
        %1113 = vmatmul.mubr.f32.gmra.mrb[0].mxu0 %v1112
        %v1114 = vpop.f32.mrb[0].mxu0
        %v1115 = vadd.f32 %v1006, %v1114
        %v1116 = vpop.f32.mrb[0].mxu0
        %v1117 = vadd.f32 %v1008, %v1116
        %1118 = vmatprep.mubr.f32.mxu0 0.0
        %v1119 = vand.u32 %v330, 4294901760
        %1120 = vmatmul.mubr.f32.gmra.mrb[0].mxu0 %v1119
        %v1121 = vpop.f32.mrb[0].mxu0
        %v1122 = vadd.f32 %v1013, %v1121
        %v1123 = vpop.f32.mrb[0].mxu0
        %v1124 = vadd.f32 %v1015, %v1123
        %1125 = vdwg.mxu0
        %vm1126 = vcmask 64512
        %v1128 = vsel %vm1126, %v293, 0
        %v1131 = vsel %vm1126, %v294, 0
        %v1134 = vsel %vm1126, %v295, 0
        %v1137 = vsel %vm1126, %v296, 0
        %v1139 = vand.u32 %v298, 4294901760
        %1140 = vmatprep.subr.mxu0 %v1139
        %v1141 = vand.u32 %v297, 4294901760
        %1142 = vmatpush1.msra.mxu0 %v1141
        %1143 = vmatprep.subr.mxu0 0.0
        %1144 = vmatpush1.msra.mxu0 0.0
        %1145 = vmatprep.subr.mxu0 0.0
        %1146 = vmatpush1.msra.mxu0 0.0
        %1147 = vmatprep.subr.mxu0 0.0
        %1148 = vmatpush1.msra.mxu0 0.0
        %1149 = vmatprep.subr.mxu0 0.0
        %1150 = vmatpush1.msra.mxu0 0.0
        %1151 = vmatprep.subr.mxu0 0.0
        %1152 = vmatpush1.msra.mxu0 0.0
        %1153 = vmatprep.subr.mxu0 0.0
        %1154 = vmatpush1.msra.mxu0 0.0
        %1155 = vmatprep.subr.mxu0 0.0
        %1156 = vmatpush1.msra.mxu0 0.0
        %1157 = vmatprep.subr.mxu0 0.0
        %1158 = vmatpush1.msra.mxu0 0.0
        %1159 = vmatprep.subr.mxu0 0.0
        %1160 = vmatpush1.msra.mxu0 0.0
        %1161 = vmatprep.subr.mxu0 0.0
        %1162 = vmatpush1.msra.mxu0 0.0
        %1163 = vmatprep.subr.mxu0 0.0
        %1164 = vmatpush1.msra.mxu0 0.0
        %1165 = vmatprep.subr.mxu0 0.0
        %1166 = vmatpush1.msra.mxu0 0.0
        %1167 = vmatprep.subr.mxu0 0.0
        %1168 = vmatpush1.msra.mxu0 0.0
        %1169 = vmatprep.subr.mxu0 0.0
        %1170 = vmatpush1.msra.mxu0 0.0
        %1171 = vmatprep.subr.mxu0 0.0
        %1172 = vmatpush1.msra.mxu0 0.0
        %1173 = vmatprep.subr.mxu0 0.0
        %1174 = vmatpush1.msra.mxu0 0.0
        %1175 = vmatprep.subr.mxu0 0.0
        %1176 = vmatpush1.msra.mxu0 0.0
        %1177 = vmatprep.subr.mxu0 0.0
        %1178 = vmatpush1.msra.mxu0 0.0
        %1179 = vmatprep.subr.mxu0 0.0
        %1180 = vmatpush1.msra.mxu0 0.0
        %1181 = vmatprep.subr.mxu0 0.0
        %1182 = vmatpush1.msra.mxu0 0.0
        %1183 = vmatprep.subr.mxu0 0.0
        %1184 = vmatpush1.msra.mxu0 0.0
        %1185 = vmatprep.subr.mxu0 0.0
        %1186 = vmatpush1.msra.mxu0 0.0
        %1187 = vmatprep.subr.mxu0 0.0
        %1188 = vmatpush1.msra.mxu0 0.0
        %1189 = vmatprep.subr.mxu0 0.0
        %1190 = vmatpush1.msra.mxu0 0.0
        %1191 = vmatprep.subr.mxu0 0.0
        %1192 = vmatpush1.msra.mxu0 0.0
        %1193 = vmatprep.subr.mxu0 0.0
        %1194 = vmatpush1.msra.mxu0 0.0
        %1195 = vmatprep.subr.mxu0 0.0
        %1196 = vmatpush1.msra.mxu0 0.0
        %1197 = vmatprep.subr.mxu0 0.0
        %1198 = vmatpush1.msra.mxu0 0.0
        %1199 = vmatprep.subr.mxu0 0.0
        %1200 = vmatpush1.msra.mxu0 0.0
        %1201 = vmatprep.subr.mxu0 0.0
        %1202 = vmatpush1.msra.mxu0 0.0
        %1203 = vmatprep.subr.mxu0 0.0
        %1204 = vmatpush1.msra.mxu0 0.0
        %1205 = vmatprep.mubr.f32.mxu0 0.0
        %v1206 = vand.u32 %v1128, 4294901760
        %v1207 = vsub.f32 %v1128, %v1206
        %v1208 = vand.u32 %v1207, 4294901760
        %v1209 = vsub.f32 %v1207, %v1208
        %v1210 = vand.u32 %v1209, 4294901760
        %1211 = vmatmul.mubr.f32.gmra.mrb[0].mxu0 %v1210
        %v1212 = vpop.f32.mrb[0].mxu0
        %v1213 = vadd.f32 %v1101, %v1212
        %v1214 = vpop.f32.mrb[0].mxu0
        %v1215 = vadd.f32 %v1103, %v1214
        %1216 = vmatprep.mubr.f32.mxu0 0.0
        %v1217 = vand.u32 %v1131, 4294901760
        %v1218 = vsub.f32 %v1131, %v1217
        %v1219 = vand.u32 %v1218, 4294901760
        %v1220 = vsub.f32 %v1218, %v1219
        %v1221 = vand.u32 %v1220, 4294901760
        %1222 = vmatmul.mubr.f32.gmra.mrb[0].mxu0 %v1221
        %v1223 = vpop.f32.mrb[0].mxu0
        %v1224 = vadd.f32 %v1108, %v1223
        %v1225 = vpop.f32.mrb[0].mxu0
        %v1226 = vadd.f32 %v1110, %v1225
        %1227 = vmatprep.mubr.f32.mxu0 0.0
        %v1228 = vand.u32 %v1134, 4294901760
        %v1229 = vsub.f32 %v1134, %v1228
        %v1230 = vand.u32 %v1229, 4294901760
        %v1231 = vsub.f32 %v1229, %v1230
        %v1232 = vand.u32 %v1231, 4294901760
        %1233 = vmatmul.mubr.f32.gmra.mrb[0].mxu0 %v1232
        %v1234 = vpop.f32.mrb[0].mxu0
        %v1235 = vadd.f32 %v1115, %v1234
        %v1236 = vpop.f32.mrb[0].mxu0
        %v1237 = vadd.f32 %v1117, %v1236
        %1238 = vmatprep.mubr.f32.mxu0 0.0
        %v1239 = vand.u32 %v1137, 4294901760
        %v1240 = vsub.f32 %v1137, %v1239
        %v1241 = vand.u32 %v1240, 4294901760
        %v1242 = vsub.f32 %v1240, %v1241
        %v1243 = vand.u32 %v1242, 4294901760
        %1244 = vmatmul.mubr.f32.gmra.mrb[0].mxu0 %v1243
        %v1245 = vpop.f32.mrb[0].mxu0
        %v1246 = vadd.f32 %v1122, %v1245
        %v1247 = vpop.f32.mrb[0].mxu0
        %v1248 = vadd.f32 %v1124, %v1247
        %1249 = vdwg.mxu0
        %v1250 = vand.u32 %v298, 4294901760
        %v1251 = vsub.f32 %v298, %v1250
        %v1252 = vand.u32 %v1251, 4294901760
        %v1253 = vsub.f32 %v1251, %v1252
        %v1254 = vand.u32 %v1253, 4294901760
        %1255 = vmatprep.subr.mxu0 %v1254
        %v1256 = vand.u32 %v297, 4294901760
        %v1257 = vsub.f32 %v297, %v1256
        %v1258 = vand.u32 %v1257, 4294901760
        %v1259 = vsub.f32 %v1257, %v1258
        %v1260 = vand.u32 %v1259, 4294901760
        %1261 = vmatpush1.msra.mxu0 %v1260
        %1262 = vmatprep.subr.mxu0 0.0
        %1263 = vmatpush1.msra.mxu0 0.0
        %1264 = vmatprep.subr.mxu0 0.0
        %1265 = vmatpush1.msra.mxu0 0.0
        %1266 = vmatprep.subr.mxu0 0.0
        %1267 = vmatpush1.msra.mxu0 0.0
        %1268 = vmatprep.subr.mxu0 0.0
        %1269 = vmatpush1.msra.mxu0 0.0
        %1270 = vmatprep.subr.mxu0 0.0
        %1271 = vmatpush1.msra.mxu0 0.0
        %1272 = vmatprep.subr.mxu0 0.0
        %1273 = vmatpush1.msra.mxu0 0.0
        %1274 = vmatprep.subr.mxu0 0.0
        %1275 = vmatpush1.msra.mxu0 0.0
        %1276 = vmatprep.subr.mxu0 0.0
        %1277 = vmatpush1.msra.mxu0 0.0
        %1278 = vmatprep.subr.mxu0 0.0
        %1279 = vmatpush1.msra.mxu0 0.0
        %1280 = vmatprep.subr.mxu0 0.0
        %1281 = vmatpush1.msra.mxu0 0.0
        %1282 = vmatprep.subr.mxu0 0.0
        %1283 = vmatpush1.msra.mxu0 0.0
        %1284 = vmatprep.subr.mxu0 0.0
        %1285 = vmatpush1.msra.mxu0 0.0
        %1286 = vmatprep.subr.mxu0 0.0
        %1287 = vmatpush1.msra.mxu0 0.0
        %1288 = vmatprep.subr.mxu0 0.0
        %1289 = vmatpush1.msra.mxu0 0.0
        %1290 = vmatprep.subr.mxu0 0.0
        %1291 = vmatpush1.msra.mxu0 0.0
        %1292 = vmatprep.subr.mxu0 0.0
        %1293 = vmatpush1.msra.mxu0 0.0
        %1294 = vmatprep.subr.mxu0 0.0
        %1295 = vmatpush1.msra.mxu0 0.0
        %1296 = vmatprep.subr.mxu0 0.0
        %1297 = vmatpush1.msra.mxu0 0.0
        %1298 = vmatprep.subr.mxu0 0.0
        %1299 = vmatpush1.msra.mxu0 0.0
        %1300 = vmatprep.subr.mxu0 0.0
        %1301 = vmatpush1.msra.mxu0 0.0
        %1302 = vmatprep.subr.mxu0 0.0
        %1303 = vmatpush1.msra.mxu0 0.0
        %1304 = vmatprep.subr.mxu0 0.0
        %1305 = vmatpush1.msra.mxu0 0.0
        %1306 = vmatprep.subr.mxu0 0.0
        %1307 = vmatpush1.msra.mxu0 0.0
        %1308 = vmatprep.subr.mxu0 0.0
        %1309 = vmatpush1.msra.mxu0 0.0
        %1310 = vmatprep.subr.mxu0 0.0
        %1311 = vmatpush1.msra.mxu0 0.0
        %1312 = vmatprep.subr.mxu0 0.0
        %1313 = vmatpush1.msra.mxu0 0.0
        %1314 = vmatprep.subr.mxu0 0.0
        %1315 = vmatpush1.msra.mxu0 0.0
        %1316 = vmatprep.subr.mxu0 0.0
        %1317 = vmatpush1.msra.mxu0 0.0
        %1318 = vmatprep.subr.mxu0 0.0
        %1319 = vmatpush1.msra.mxu0 0.0
        %1320 = vmatprep.subr.mxu0 0.0
        %1321 = vmatpush1.msra.mxu0 0.0
        %1322 = vmatprep.subr.mxu0 0.0
        %1323 = vmatpush1.msra.mxu0 0.0
        %1324 = vmatprep.mubr.f32.mxu0 0.0
        %v1325 = vand.u32 %v1128, 4294901760
        %1326 = vmatmul.mubr.f32.gmra.mrb[0].mxu0 %v1325
        %v1327 = vpop.f32.mrb[0].mxu0
        %v1328 = vadd.f32 %v1213, %v1327
        %v1329 = vpop.f32.mrb[0].mxu0
        %v1330 = vadd.f32 %v1215, %v1329
        %1331 = vmatprep.mubr.f32.mxu0 0.0
        %v1332 = vand.u32 %v1131, 4294901760
        %1333 = vmatmul.mubr.f32.gmra.mrb[0].mxu0 %v1332
        %v1334 = vpop.f32.mrb[0].mxu0
        %v1335 = vadd.f32 %v1224, %v1334
        %v1336 = vpop.f32.mrb[0].mxu0
        %v1337 = vadd.f32 %v1226, %v1336
        %1338 = vmatprep.mubr.f32.mxu0 0.0
        %v1339 = vand.u32 %v1134, 4294901760
        %1340 = vmatmul.mubr.f32.gmra.mrb[0].mxu0 %v1339
        %v1341 = vpop.f32.mrb[0].mxu0
        %v1342 = vadd.f32 %v1235, %v1341
        %v1343 = vpop.f32.mrb[0].mxu0
        %v1344 = vadd.f32 %v1237, %v1343
        %1345 = vmatprep.mubr.f32.mxu0 0.0
        %v1346 = vand.u32 %v1137, 4294901760
        %1347 = vmatmul.mubr.f32.gmra.mrb[0].mxu0 %v1346
        %v1348 = vpop.f32.mrb[0].mxu0
        %v1349 = vadd.f32 %v1246, %v1348
        %v1350 = vpop.f32.mrb[0].mxu0
        %v1351 = vadd.f32 %v1248, %v1350
        %1352 = vdwg.mxu0
        %v1353 = vand.u32 %v298, 4294901760
        %v1354 = vsub.f32 %v298, %v1353
        %1355 = vmatprep.subr.mxu0 %v1354
        %v1356 = vand.u32 %v297, 4294901760
        %v1357 = vsub.f32 %v297, %v1356
        %1358 = vmatpush1.msra.mxu0 %v1357
        %1359 = vmatprep.subr.mxu0 0.0
        %1360 = vmatpush1.msra.mxu0 0.0
        %1361 = vmatprep.subr.mxu0 0.0
        %1362 = vmatpush1.msra.mxu0 0.0
        %1363 = vmatprep.subr.mxu0 0.0
        %1364 = vmatpush1.msra.mxu0 0.0
        %1365 = vmatprep.subr.mxu0 0.0
        %1366 = vmatpush1.msra.mxu0 0.0
        %1367 = vmatprep.subr.mxu0 0.0
        %1368 = vmatpush1.msra.mxu0 0.0
        %1369 = vmatprep.subr.mxu0 0.0
        %1370 = vmatpush1.msra.mxu0 0.0
        %1371 = vmatprep.subr.mxu0 0.0
        %1372 = vmatpush1.msra.mxu0 0.0
        %1373 = vmatprep.subr.mxu0 0.0
        %1374 = vmatpush1.msra.mxu0 0.0
        %1375 = vmatprep.subr.mxu0 0.0
        %1376 = vmatpush1.msra.mxu0 0.0
        %1377 = vmatprep.subr.mxu0 0.0
        %1378 = vmatpush1.msra.mxu0 0.0
        %1379 = vmatprep.subr.mxu0 0.0
        %1380 = vmatpush1.msra.mxu0 0.0
        %1381 = vmatprep.subr.mxu0 0.0
        %1382 = vmatpush1.msra.mxu0 0.0
        %1383 = vmatprep.subr.mxu0 0.0
        %1384 = vmatpush1.msra.mxu0 0.0
        %1385 = vmatprep.subr.mxu0 0.0
        %1386 = vmatpush1.msra.mxu0 0.0
        %1387 = vmatprep.subr.mxu0 0.0
        %1388 = vmatpush1.msra.mxu0 0.0
        %1389 = vmatprep.subr.mxu0 0.0
        %1390 = vmatpush1.msra.mxu0 0.0
        %1391 = vmatprep.subr.mxu0 0.0
        %1392 = vmatpush1.msra.mxu0 0.0
        %1393 = vmatprep.subr.mxu0 0.0
        %1394 = vmatpush1.msra.mxu0 0.0
        %1395 = vmatprep.subr.mxu0 0.0
        %1396 = vmatpush1.msra.mxu0 0.0
        %1397 = vmatprep.subr.mxu0 0.0
        %1398 = vmatpush1.msra.mxu0 0.0
        %1399 = vmatprep.subr.mxu0 0.0
        %1400 = vmatpush1.msra.mxu0 0.0
        %1401 = vmatprep.subr.mxu0 0.0
        %1402 = vmatpush1.msra.mxu0 0.0
        %1403 = vmatprep.subr.mxu0 0.0
        %1404 = vmatpush1.msra.mxu0 0.0
        %1405 = vmatprep.subr.mxu0 0.0
        %1406 = vmatpush1.msra.mxu0 0.0
        %1407 = vmatprep.subr.mxu0 0.0
        %1408 = vmatpush1.msra.mxu0 0.0
        %1409 = vmatprep.subr.mxu0 0.0
        %1410 = vmatpush1.msra.mxu0 0.0
        %1411 = vmatprep.subr.mxu0 0.0
        %1412 = vmatpush1.msra.mxu0 0.0
        %1413 = vmatprep.subr.mxu0 0.0
        %1414 = vmatpush1.msra.mxu0 0.0
        %1415 = vmatprep.subr.mxu0 0.0
        %1416 = vmatpush1.msra.mxu0 0.0
        %1417 = vmatprep.subr.mxu0 0.0
        %1418 = vmatpush1.msra.mxu0 0.0
        %1419 = vmatprep.subr.mxu0 0.0
        %1420 = vmatpush1.msra.mxu0 0.0
        %1421 = vmatprep.mubr.f32.mxu0 0.0
        %v1422 = vand.u32 %v1128, 4294901760
        %v1423 = vsub.f32 %v1128, %v1422
        %1424 = vmatmul.mubr.f32.gmra.mrb[0].mxu0 %v1423
        %v1425 = vpop.f32.mrb[0].mxu0
        %v1426 = vadd.f32 %v1328, %v1425
        %v1427 = vpop.f32.mrb[0].mxu0
        %v1428 = vadd.f32 %v1330, %v1427
        %1429 = vmatprep.mubr.f32.mxu0 0.0
        %v1430 = vand.u32 %v1131, 4294901760
        %v1431 = vsub.f32 %v1131, %v1430
        %1432 = vmatmul.mubr.f32.gmra.mrb[0].mxu0 %v1431
        %v1433 = vpop.f32.mrb[0].mxu0
        %v1434 = vadd.f32 %v1335, %v1433
        %v1435 = vpop.f32.mrb[0].mxu0
        %v1436 = vadd.f32 %v1337, %v1435
        %1437 = vmatprep.mubr.f32.mxu0 0.0
        %v1438 = vand.u32 %v1134, 4294901760
        %v1439 = vsub.f32 %v1134, %v1438
        %1440 = vmatmul.mubr.f32.gmra.mrb[0].mxu0 %v1439
        %v1441 = vpop.f32.mrb[0].mxu0
        %v1442 = vadd.f32 %v1342, %v1441
        %v1443 = vpop.f32.mrb[0].mxu0
        %v1444 = vadd.f32 %v1344, %v1443
        %1445 = vmatprep.mubr.f32.mxu0 0.0
        %v1446 = vand.u32 %v1137, 4294901760
        %v1447 = vsub.f32 %v1137, %v1446
        %1448 = vmatmul.mubr.f32.gmra.mrb[0].mxu0 %v1447
        %v1449 = vpop.f32.mrb[0].mxu0
        %v1450 = vadd.f32 %v1349, %v1449
        %v1451 = vpop.f32.mrb[0].mxu0
        %v1452 = vadd.f32 %v1351, %v1451
        %1453 = vdwg.mxu0
        %v1454 = vand.u32 %v298, 4294901760
        %1455 = vmatprep.subr.mxu0 %v1454
        %v1456 = vand.u32 %v297, 4294901760
        %1457 = vmatpush1.msra.mxu0 %v1456
        %1458 = vmatprep.subr.mxu0 0.0
        %1459 = vmatpush1.msra.mxu0 0.0
        %1460 = vmatprep.subr.mxu0 0.0
        %1461 = vmatpush1.msra.mxu0 0.0
        %1462 = vmatprep.subr.mxu0 0.0
        %1463 = vmatpush1.msra.mxu0 0.0
        %1464 = vmatprep.subr.mxu0 0.0
        %1465 = vmatpush1.msra.mxu0 0.0
        %1466 = vmatprep.subr.mxu0 0.0
        %1467 = vmatpush1.msra.mxu0 0.0
        %1468 = vmatprep.subr.mxu0 0.0
        %1469 = vmatpush1.msra.mxu0 0.0
        %1470 = vmatprep.subr.mxu0 0.0
        %1471 = vmatpush1.msra.mxu0 0.0
        %1472 = vmatprep.subr.mxu0 0.0
        %1473 = vmatpush1.msra.mxu0 0.0
        %1474 = vmatprep.subr.mxu0 0.0
        %1475 = vmatpush1.msra.mxu0 0.0
        %1476 = vmatprep.subr.mxu0 0.0
        %1477 = vmatpush1.msra.mxu0 0.0
        %1478 = vmatprep.subr.mxu0 0.0
        %1479 = vmatpush1.msra.mxu0 0.0
        %1480 = vmatprep.subr.mxu0 0.0
        %1481 = vmatpush1.msra.mxu0 0.0
        %1482 = vmatprep.subr.mxu0 0.0
        %1483 = vmatpush1.msra.mxu0 0.0
        %1484 = vmatprep.subr.mxu0 0.0
        %1485 = vmatpush1.msra.mxu0 0.0
        %1486 = vmatprep.subr.mxu0 0.0
        %1487 = vmatpush1.msra.mxu0 0.0
        %1488 = vmatprep.subr.mxu0 0.0
        %1489 = vmatpush1.msra.mxu0 0.0
        %1490 = vmatprep.subr.mxu0 0.0
        %1491 = vmatpush1.msra.mxu0 0.0
        %1492 = vmatprep.subr.mxu0 0.0
        %1493 = vmatpush1.msra.mxu0 0.0
        %1494 = vmatprep.subr.mxu0 0.0
        %1495 = vmatpush1.msra.mxu0 0.0
        %1496 = vmatprep.subr.mxu0 0.0
        %1497 = vmatpush1.msra.mxu0 0.0
        %1498 = vmatprep.subr.mxu0 0.0
        %1499 = vmatpush1.msra.mxu0 0.0
        %1500 = vmatprep.subr.mxu0 0.0
        %1501 = vmatpush1.msra.mxu0 0.0
        %1502 = vmatprep.subr.mxu0 0.0
        %1503 = vmatpush1.msra.mxu0 0.0
        %1504 = vmatprep.subr.mxu0 0.0
        %1505 = vmatpush1.msra.mxu0 0.0
        %1506 = vmatprep.subr.mxu0 0.0
        %1507 = vmatpush1.msra.mxu0 0.0
        %1508 = vmatprep.subr.mxu0 0.0
        %1509 = vmatpush1.msra.mxu0 0.0
        %1510 = vmatprep.subr.mxu0 0.0
        %1511 = vmatpush1.msra.mxu0 0.0
        %1512 = vmatprep.subr.mxu0 0.0
        %1513 = vmatpush1.msra.mxu0 0.0
        %1514 = vmatprep.subr.mxu0 0.0
        %1515 = vmatpush1.msra.mxu0 0.0
        %1516 = vmatprep.subr.mxu0 0.0
        %1517 = vmatpush1.msra.mxu0 0.0
        %1518 = vmatprep.subr.mxu0 0.0
        %1519 = vmatpush1.msra.mxu0 0.0
        %1520 = vmatprep.mubr.f32.mxu0 0.0
        %v1521 = vand.u32 %v1128, 4294901760
        %v1522 = vsub.f32 %v1128, %v1521
        %v1523 = vand.u32 %v1522, 4294901760
        %1524 = vmatmul.mubr.f32.gmra.mrb[0].mxu0 %v1523
        %v1525 = vpop.f32.mrb[0].mxu0
        %v1526 = vadd.f32 %v1426, %v1525
        %v1527 = vpop.f32.mrb[0].mxu0
        %v1528 = vadd.f32 %v1428, %v1527
        %1529 = vmatprep.mubr.f32.mxu0 0.0
        %v1530 = vand.u32 %v1131, 4294901760
        %v1531 = vsub.f32 %v1131, %v1530
        %v1532 = vand.u32 %v1531, 4294901760
        %1533 = vmatmul.mubr.f32.gmra.mrb[0].mxu0 %v1532
        %v1534 = vpop.f32.mrb[0].mxu0
        %v1535 = vadd.f32 %v1434, %v1534
        %v1536 = vpop.f32.mrb[0].mxu0
        %v1537 = vadd.f32 %v1436, %v1536
        %1538 = vmatprep.mubr.f32.mxu0 0.0
        %v1539 = vand.u32 %v1134, 4294901760
        %v1540 = vsub.f32 %v1134, %v1539
        %v1541 = vand.u32 %v1540, 4294901760
        %1542 = vmatmul.mubr.f32.gmra.mrb[0].mxu0 %v1541
        %v1543 = vpop.f32.mrb[0].mxu0
        %v1544 = vadd.f32 %v1442, %v1543
        %v1545 = vpop.f32.mrb[0].mxu0
        %v1546 = vadd.f32 %v1444, %v1545
        %1547 = vmatprep.mubr.f32.mxu0 0.0
        %v1548 = vand.u32 %v1137, 4294901760
        %v1549 = vsub.f32 %v1137, %v1548
        %v1550 = vand.u32 %v1549, 4294901760
        %1551 = vmatmul.mubr.f32.gmra.mrb[0].mxu0 %v1550
        %v1552 = vpop.f32.mrb[0].mxu0
        %v1553 = vadd.f32 %v1450, %v1552
        %v1554 = vpop.f32.mrb[0].mxu0
        %v1555 = vadd.f32 %v1452, %v1554
        %1556 = vdwg.mxu0
        %v1557 = vand.u32 %v298, 4294901760
        %v1558 = vsub.f32 %v298, %v1557
        %v1559 = vand.u32 %v1558, 4294901760
        %1560 = vmatprep.subr.mxu0 %v1559
        %v1561 = vand.u32 %v297, 4294901760
        %v1562 = vsub.f32 %v297, %v1561
        %v1563 = vand.u32 %v1562, 4294901760
        %1564 = vmatpush1.msra.mxu0 %v1563
        %1565 = vmatprep.subr.mxu0 0.0
        %1566 = vmatpush1.msra.mxu0 0.0
        %1567 = vmatprep.subr.mxu0 0.0
        %1568 = vmatpush1.msra.mxu0 0.0
        %1569 = vmatprep.subr.mxu0 0.0
        %1570 = vmatpush1.msra.mxu0 0.0
        %1571 = vmatprep.subr.mxu0 0.0
        %1572 = vmatpush1.msra.mxu0 0.0
        %1573 = vmatprep.subr.mxu0 0.0
        %1574 = vmatpush1.msra.mxu0 0.0
        %1575 = vmatprep.subr.mxu0 0.0
        %1576 = vmatpush1.msra.mxu0 0.0
        %1577 = vmatprep.subr.mxu0 0.0
        %1578 = vmatpush1.msra.mxu0 0.0
        %1579 = vmatprep.subr.mxu0 0.0
        %1580 = vmatpush1.msra.mxu0 0.0
        %1581 = vmatprep.subr.mxu0 0.0
        %1582 = vmatpush1.msra.mxu0 0.0
        %1583 = vmatprep.subr.mxu0 0.0
        %1584 = vmatpush1.msra.mxu0 0.0
        %1585 = vmatprep.subr.mxu0 0.0
        %1586 = vmatpush1.msra.mxu0 0.0
        %1587 = vmatprep.subr.mxu0 0.0
        %1588 = vmatpush1.msra.mxu0 0.0
        %1589 = vmatprep.subr.mxu0 0.0
        %1590 = vmatpush1.msra.mxu0 0.0
        %1591 = vmatprep.subr.mxu0 0.0
        %1592 = vmatpush1.msra.mxu0 0.0
        %1593 = vmatprep.subr.mxu0 0.0
        %1594 = vmatpush1.msra.mxu0 0.0
        %1595 = vmatprep.subr.mxu0 0.0
        %1596 = vmatpush1.msra.mxu0 0.0
        %1597 = vmatprep.subr.mxu0 0.0
        %1598 = vmatpush1.msra.mxu0 0.0
        %1599 = vmatprep.subr.mxu0 0.0
        %1600 = vmatpush1.msra.mxu0 0.0
        %1601 = vmatprep.subr.mxu0 0.0
        %1602 = vmatpush1.msra.mxu0 0.0
        %1603 = vmatprep.subr.mxu0 0.0
        %1604 = vmatpush1.msra.mxu0 0.0
        %1605 = vmatprep.subr.mxu0 0.0
        %1606 = vmatpush1.msra.mxu0 0.0
        %1607 = vmatprep.subr.mxu0 0.0
        %1608 = vmatpush1.msra.mxu0 0.0
        %1609 = vmatprep.subr.mxu0 0.0
        %1610 = vmatpush1.msra.mxu0 0.0
        %1611 = vmatprep.subr.mxu0 0.0
        %1612 = vmatpush1.msra.mxu0 0.0
        %1613 = vmatprep.subr.mxu0 0.0
        %1614 = vmatpush1.msra.mxu0 0.0
        %1615 = vmatprep.subr.mxu0 0.0
        %1616 = vmatpush1.msra.mxu0 0.0
        %1617 = vmatprep.subr.mxu0 0.0
        %1618 = vmatpush1.msra.mxu0 0.0
        %1619 = vmatprep.subr.mxu0 0.0
        %1620 = vmatpush1.msra.mxu0 0.0
        %1621 = vmatprep.subr.mxu0 0.0
        %1622 = vmatpush1.msra.mxu0 0.0
        %1623 = vmatprep.subr.mxu0 0.0
        %1624 = vmatpush1.msra.mxu0 0.0
        %1625 = vmatprep.subr.mxu0 0.0
        %1626 = vmatpush1.msra.mxu0 0.0
        %1627 = vmatprep.mubr.f32.mxu0 0.0
        %v1628 = vand.u32 %v1128, 4294901760
        %1629 = vmatmul.mubr.f32.gmra.mrb[0].mxu0 %v1628
        %v1630 = vpop.f32.mrb[0].mxu0
        %v1631 = vadd.f32 %v1526, %v1630
        %v1632 = vpop.f32.mrb[0].mxu0
        %v1633 = vadd.f32 %v1528, %v1632
        %1634 = vmatprep.mubr.f32.mxu0 0.0
        %v1635 = vand.u32 %v1131, 4294901760
        %1636 = vmatmul.mubr.f32.gmra.mrb[0].mxu0 %v1635
        %v1637 = vpop.f32.mrb[0].mxu0
        %v1638 = vadd.f32 %v1535, %v1637
        %v1639 = vpop.f32.mrb[0].mxu0
        %v1640 = vadd.f32 %v1537, %v1639
        %1641 = vmatprep.mubr.f32.mxu0 0.0
        %v1642 = vand.u32 %v1134, 4294901760
        %1643 = vmatmul.mubr.f32.gmra.mrb[0].mxu0 %v1642
        %v1644 = vpop.f32.mrb[0].mxu0
        %v1645 = vadd.f32 %v1544, %v1644
        %v1646 = vpop.f32.mrb[0].mxu0
        %v1647 = vadd.f32 %v1546, %v1646
        %1648 = vmatprep.mubr.f32.mxu0 0.0
        %v1649 = vand.u32 %v1137, 4294901760
        %1650 = vmatmul.mubr.f32.gmra.mrb[0].mxu0 %v1649
        %v1651 = vpop.f32.mrb[0].mxu0
        %v1652 = vadd.f32 %v1553, %v1651
        %v1653 = vpop.f32.mrb[0].mxu0
        %v1654 = vadd.f32 %v1555, %v1653
        %1655 = vdwg.mxu0
        %v1656 = vand.u32 %v298, 4294901760
        %1657 = vmatprep.subr.mxu0 %v1656
        %v1658 = vand.u32 %v297, 4294901760
        %1659 = vmatpush1.msra.mxu0 %v1658
        %1660 = vmatprep.subr.mxu0 0.0
        %1661 = vmatpush1.msra.mxu0 0.0
        %1662 = vmatprep.subr.mxu0 0.0
        %1663 = vmatpush1.msra.mxu0 0.0
        %1664 = vmatprep.subr.mxu0 0.0
        %1665 = vmatpush1.msra.mxu0 0.0
        %1666 = vmatprep.subr.mxu0 0.0
        %1667 = vmatpush1.msra.mxu0 0.0
        %1668 = vmatprep.subr.mxu0 0.0
        %1669 = vmatpush1.msra.mxu0 0.0
        %1670 = vmatprep.subr.mxu0 0.0
        %1671 = vmatpush1.msra.mxu0 0.0
        %1672 = vmatprep.subr.mxu0 0.0
        %1673 = vmatpush1.msra.mxu0 0.0
        %1674 = vmatprep.subr.mxu0 0.0
        %1675 = vmatpush1.msra.mxu0 0.0
        %1676 = vmatprep.subr.mxu0 0.0
        %1677 = vmatpush1.msra.mxu0 0.0
        %1678 = vmatprep.subr.mxu0 0.0
        %1679 = vmatpush1.msra.mxu0 0.0
        %1680 = vmatprep.subr.mxu0 0.0
        %1681 = vmatpush1.msra.mxu0 0.0
        %1682 = vmatprep.subr.mxu0 0.0
        %1683 = vmatpush1.msra.mxu0 0.0
        %1684 = vmatprep.subr.mxu0 0.0
        %1685 = vmatpush1.msra.mxu0 0.0
        %1686 = vmatprep.subr.mxu0 0.0
        %1687 = vmatpush1.msra.mxu0 0.0
        %1688 = vmatprep.subr.mxu0 0.0
        %1689 = vmatpush1.msra.mxu0 0.0
        %1690 = vmatprep.subr.mxu0 0.0
        %1691 = vmatpush1.msra.mxu0 0.0
        %1692 = vmatprep.subr.mxu0 0.0
        %1693 = vmatpush1.msra.mxu0 0.0
        %1694 = vmatprep.subr.mxu0 0.0
        %1695 = vmatpush1.msra.mxu0 0.0
        %1696 = vmatprep.subr.mxu0 0.0
        %1697 = vmatpush1.msra.mxu0 0.0
        %1698 = vmatprep.subr.mxu0 0.0
        %1699 = vmatpush1.msra.mxu0 0.0
        %1700 = vmatprep.subr.mxu0 0.0
        %1701 = vmatpush1.msra.mxu0 0.0
        %1702 = vmatprep.subr.mxu0 0.0
        %1703 = vmatpush1.msra.mxu0 0.0
        %1704 = vmatprep.subr.mxu0 0.0
        %1705 = vmatpush1.msra.mxu0 0.0
        %1706 = vmatprep.subr.mxu0 0.0
        %1707 = vmatpush1.msra.mxu0 0.0
        %1708 = vmatprep.subr.mxu0 0.0
        %1709 = vmatpush1.msra.mxu0 0.0
        %1710 = vmatprep.subr.mxu0 0.0
        %1711 = vmatpush1.msra.mxu0 0.0
        %1712 = vmatprep.subr.mxu0 0.0
        %1713 = vmatpush1.msra.mxu0 0.0
        %1714 = vmatprep.subr.mxu0 0.0
        %1715 = vmatpush1.msra.mxu0 0.0
        %1716 = vmatprep.subr.mxu0 0.0
        %1717 = vmatpush1.msra.mxu0 0.0
        %1718 = vmatprep.subr.mxu0 0.0
        %1719 = vmatpush1.msra.mxu0 0.0
        %1720 = vmatprep.subr.mxu0 0.0
        %1721 = vmatpush1.msra.mxu0 0.0
        %1722 = vmatprep.mubr.f32.mxu0 0.0
        %v1723 = vand.u32 %v1128, 4294901760
        %1724 = vmatmul.mubr.f32.gmra.mrb[0].mxu0 %v1723
        %v1725 = vpop.f32.mrb[0].mxu0
        %v1726 = vadd.f32 %v1631, %v1725
        %v1727 = vpop.f32.mrb[0].mxu0
        %v1728 = vadd.f32 %v1633, %v1727
        %1729 = vmatprep.mubr.f32.mxu0 0.0
        %v1730 = vand.u32 %v1131, 4294901760
        %1731 = vmatmul.mubr.f32.gmra.mrb[0].mxu0 %v1730
        %v1732 = vpop.f32.mrb[0].mxu0
        %v1733 = vadd.f32 %v1638, %v1732
        %v1734 = vpop.f32.mrb[0].mxu0
        %v1735 = vadd.f32 %v1640, %v1734
        %1736 = vmatprep.mubr.f32.mxu0 0.0
        %v1737 = vand.u32 %v1134, 4294901760
        %1738 = vmatmul.mubr.f32.gmra.mrb[0].mxu0 %v1737
        %v1739 = vpop.f32.mrb[0].mxu0
        %v1740 = vadd.f32 %v1645, %v1739
        %v1741 = vpop.f32.mrb[0].mxu0
        %v1742 = vadd.f32 %v1647, %v1741
        %1743 = vmatprep.mubr.f32.mxu0 0.0
        %v1744 = vand.u32 %v1137, 4294901760
        %1745 = vmatmul.mubr.f32.gmra.mrb[0].mxu0 %v1744
        %v1746 = vpop.f32.mrb[0].mxu0
        %v1747 = vadd.f32 %v1652, %v1746
        %v1748 = vpop.f32.mrb[0].mxu0
        %v1749 = vadd.f32 %v1654, %v1748
        %1750 = vdwg.mxu0
        %v1751 = vadd.f32 %v1726, %v1728
        %1752 = vadd.xlane.f32.xlu0 %v1751
        %v1753 = vpop.xlane.xlu0 %1752
        %v1754 = vadd.f32 %v1733, %v1735
        %1755 = vadd.xlane.f32.xlu0 %v1754
        %v1756 = vpop.xlane.xlu0 %1755
        %v1757 = vadd.f32 %v1740, %v1742
        %1758 = vadd.xlane.f32.xlu0 %v1757
        %v1759 = vpop.xlane.xlu0 %1758
        %v1760 = vadd.f32 %v1747, %v1749
        %1761 = vadd.xlane.f32.xlu0 %v1760
        %v1762 = vpop.xlane.xlu0 %1761
        %v1763 = vmul.f32 %v1753, 0.00390625
        %v1764 = vmul.f32 %v1756, 0.00390625
        %v1765 = vmul.f32 %v1759, 0.00390625
        %v1766 = vmul.f32 %v1762, 0.00390625
        %v1767 = vsub.f32 %v1726, %v1763
        %v1768 = vsub.f32 %v1728, %v1763
        %v1769 = vsub.f32 %v1733, %v1764
        %v1770 = vsub.f32 %v1735, %v1764
        %v1771 = vsub.f32 %v1740, %v1765
        %v1772 = vsub.f32 %v1742, %v1765
        %v1773 = vsub.f32 %v1747, %v1766
        %v1774 = vsub.f32 %v1749, %v1766
        %v1775 = vmul.f32 %v1767, %v1767
        %v1776 = vmul.f32 %v1768, %v1768
        %v1777 = vmul.f32 %v1769, %v1769
        %v1778 = vmul.f32 %v1770, %v1770
        %v1779 = vmul.f32 %v1771, %v1771
        %v1780 = vmul.f32 %v1772, %v1772
        %v1781 = vmul.f32 %v1773, %v1773
        %v1782 = vmul.f32 %v1774, %v1774
        %v1783 = vadd.f32 %v1775, %v1776
        %1784 = vadd.xlane.f32.xlu0 %v1783
        %v1785 = vpop.xlane.xlu0 %1784
        %v1786 = vadd.f32 %v1777, %v1778
        %1787 = vadd.xlane.f32.xlu0 %v1786
        %v1788 = vpop.xlane.xlu0 %1787
        %v1789 = vadd.f32 %v1779, %v1780
        %1790 = vadd.xlane.f32.xlu0 %v1789
        %v1791 = vpop.xlane.xlu0 %1790
        %v1792 = vadd.f32 %v1781, %v1782
        %1793 = vadd.xlane.f32.xlu0 %v1792
        %v1794 = vpop.xlane.xlu0 %1793
        %v1795 = vmul.f32 %v1785, 0.00390625
        %v1796 = vmul.f32 %v1788, 0.00390625
        %v1797 = vmul.f32 %v1791, 0.00390625
        %v1798 = vmul.f32 %v1794, 0.00390625
        %v1799 = vadd.f32 %v1795, 1e-05
        %v1800 = vadd.f32 %v1796, 1e-05
        %v1801 = vadd.f32 %v1797, 1e-05
        %v1802 = vadd.f32 %v1798, 1e-05
        %v1803 = vrsqrt.pop %v1799
        %v1804 = vrsqrt.pop %v1800
        %v1805 = vrsqrt.pop %v1801
        %v1806 = vrsqrt.pop %v1802
        %v1807 = vmul.f32 %v1767, %v1803
        %v1808 = vmul.f32 %v1768, %v1803
        %v1809 = vmul.f32 %v1769, %v1804
        %v1810 = vmul.f32 %v1770, %v1804
        %v1811 = vmul.f32 %v1771, %v1805
        %v1812 = vmul.f32 %v1772, %v1805
        %v1813 = vmul.f32 %v1773, %v1806
        %v1814 = vmul.f32 %v1774, %v1806
        %v1815 = vmul.f32 %v1807, 0.01
        %v1816 = vmul.f32 %v1808, 0.01
        %v1817 = vmul.f32 %v1809, 0.01
        %v1818 = vmul.f32 %v1810, 0.01
        %v1819 = vmul.f32 %v1811, 0.01
        %v1820 = vmul.f32 %v1812, 0.01
        %v1821 = vmul.f32 %v1813, 0.01
        %v1822 = vmul.f32 %v1814, 0.01
        %v1823 = vmax.f32 %v1807, %v1815
        %v1824 = vmax.f32 %v1808, %v1816
        %v1825 = vmax.f32 %v1809, %v1817
        %v1826 = vmax.f32 %v1810, %v1818
        %v1827 = vmax.f32 %v1811, %v1819
        %v1828 = vmax.f32 %v1812, %v1820
        %v1829 = vmax.f32 %v1813, %v1821
        %v1830 = vmax.f32 %v1814, %v1822
        %1831 = vst [vmem:[%s279] sm:$0xff] %v1823
        %1832 = vst [vmem:[%s279 + $0x8] sm:$0xff] %v1824
        %1833 = vst [vmem:[%s279 + $0x10] sm:$0xff] %v1825
        %1834 = vst [vmem:[%s279 + $0x18] sm:$0xff] %v1826
        %1835 = vst [vmem:[%s279 + $0x20] sm:$0xff] %v1827
        %1836 = vst [vmem:[%s279 + $0x28] sm:$0xff] %v1828
        %1837 = vst [vmem:[%s279 + $0x30] sm:$0xff] %v1829
        %1838 = vst [vmem:[%s279 + $0x38] sm:$0xff] %v1830
        %s1839 = sand.u32 %s145, 1
        %s1840 = scalar_lea.sflag [#allocation4], %s1839
        %s1841 = sand.u32 %s145, 1
        %s1842 = smul.addr %s1841, 64
        %s1843 = scalar_lea.vmem [#allocation7], %s1842
        // Predicated region
        $region45: #{tpu_custom_call.1} parent=35 // pred_check
          %p1844 = pneg %p155
        $region46: #{tpu_custom_call.1} parent=35 // pred_check_branch
          %1846 = sbr.rel (%p1844) target = $region48
        $region47: #{tpu_custom_call.1} parent=35 // pred_region
          %s1847 = smul.u32 4, %s27
          %s1849 = ssub.s32 1024, 1024
          %1850 = vsyncadd %s1840, %s1849
          %s1851 = smul.addr %s1847, 2
          %s1852 = smul.addr %s26, 8
          %s1853 = sadd.s32 %s1851, %s1852
          %s1854 = smul.addr %s1853, 128
          %s1855 = scalar_lea.hbm %s4, %s1854
          %s1856 = sshll.u32 %s1843, 4
          %s1857 = int_to_ptr.vmem [resolvable:$true] %s1856
          %1862 = dma.vmem_to_hbm [thread:$0]  %s1857, 1024, %s1855, %s1840, 256, 256, 16
        $region48: #{tpu_custom_call.1} parent=35 // pred_fallthru
          _
      $region36: #{tpu_custom_call.1} parent=5 // pred_fallthru
        _
      %p1863 = scmp.le.s32.totalorder 2, %s17
      // Predicated region
      $region49: #{tpu_custom_call.1} parent=5 // pred_check
        %p1864 = pneg %p1863
      $region50: #{tpu_custom_call.1} parent=5 // pred_check_branch
        %1866 = sbr.rel (%p1864) target = $region52
      $region51: #{tpu_custom_call.1} parent=5 // pred_region
        %s1867 = ssub.s32 %s17, 2
        // Predicated region
        $region53: #{tpu_custom_call.1} parent=51 // pred_check
          %p1868 = pneg %p161
        $region54: #{tpu_custom_call.1} parent=51 // pred_check_branch
          %1870 = sbr.rel (%p1868) target = $region56
        $region55: #{tpu_custom_call.1} parent=51 // pred_region
          %s1871 = sand.u32 %s146, 1
          %s1872 = scalar_lea.sflag [#allocation4], %s1871
          %s1873 = sand.u32 %s146, 1
          %s1874 = smul.addr %s1873, 64
          %s1875 = scalar_lea.vmem [#allocation7], %s1874
          %1876 = dma.done %s1872, 1024
        $region56: #{tpu_custom_call.1} parent=51 // pred_fallthru
          _
      $region52: #{tpu_custom_call.1} parent=5 // pred_fallthru
        _
    $region6: #{tpu_custom_call.1} parent=1 // loop_footer
      %s21 = sadd.s32 1, %s17
    $region7: #{tpu_custom_call.1} parent=1 // loop_footer_branch
      %16 = sbr.rel target = $region3
    $region8: #{tpu_custom_call.1} parent=1 // loop_exit
      _
    %1877 = vsyncpa [#allocation3], 1
    %s1878 = scalar_lea.sflag [#allocation3], 1
    %1879 = vsyncpa %s1878, 1
    %1880 = vsyncpa [#allocation6], 1
    %s1881 = scalar_lea.sflag [#allocation6], 1
    %1882 = vsyncpa %s1881, 1
    %1883 = vsyncpa [#allocation4], 1
    %s1884 = scalar_lea.sflag [#allocation4], 1
    %1885 = vsyncpa %s1884, 1

</llo_original>
